<compile_context>
chip_gen: v7x
topology: tpu7x:2x2x1
jax: 0.10.0
libtpu: 0.0.40
codegen_flags: <defaults>
</compile_context>

<pallas_src>
import functools

import jax
import jax.numpy as jnp
from jax import lax
from jax.experimental import pallas as pl
from jax.experimental.pallas import tpu as pltpu


def _rup(n, m):
    return ((n + m - 1) // m) * m


def _cdiv(a, b):
    return (a + b - 1) // b


def _vmem_cap_bytes():
    try:
        return int(pltpu.get_tpu_info().vmem_capacity_bytes) * 3 // 4
    except Exception:  # pragma: no cover - conservative fallback (fits all generations)
        return 48 * 1024 * 1024


def _vmem_limit_bytes(in_block, w_block, out_block):
    # Lane-padded VMEM footprint of one buffer of each block, x2 for double buffering.
    def _padded(shape):
        lead = 1
        for v in shape[:-2]:
            lead *= int(v)
        return lead * _rup(int(shape[-2]), 8) * _rup(int(shape[-1]), 128) * 4

    need = 2 * (_padded(in_block) + _padded(w_block) + _padded(out_block))
    return int(min(max(2 * need + (4 << 20), 32 << 20), _vmem_cap_bytes()))


def _pick_toh(Ho, Wo, Cout):
    """Rows per grid step: divisor of Ho, M=toh*Wo >= ~512, >=2 row blocks, VMEM-capped."""
    out_row_bytes = _rup(Wo, 8) * _rup(Cout, 128) * 4
    vmem_rows = max(1, (8 << 20) // (2 * out_row_bytes))
    max_rows = max(8, 512 // max(Wo, 1))
    max_rows = min(max_rows, vmem_rows, Ho)
    if Ho >= 2:
        max_rows = min(max_rows, max(1, Ho // 2))  # keep >=2 row blocks (megacore/pipeline)
    best = 1
    for t in range(1, max_rows + 1):
        if Ho % t == 0:
            best = t
    return best


def _cdilated_kernel(xp_ref, w_ref, o_ref, *, k, d, s, toh, wo, cin, cout, fuse):
    # xp_ref: (1, s*s, Hq, Wq, Cin)   stride-phase planes of the padded NHWC image
    #                                 (resident across the row-block axis of this batch elem)
    # w_ref:  (k*k*Cin, Cout) if fuse else (k*k, Cin, Cout)   tap-major weight
    # o_ref:  (1, toh, Wo, Cout)      output row block
    row0 = pl.program_id(1) * toh  # first output row of this grid step

    def tap(ki, kj):
        # output (R, C) reads padded input (R*s + ki*d, C*s + kj*d); with the phase
        # decomposition that is plane (ki*d % s, kj*d % s), row R + ki*d//s, col C + kj*d//s.
        phase = ((ki * d) % s) * s + ((kj * d) % s)
        return xp_ref[0, phase,
                      pl.ds(row0 + (ki * d) // s, toh),
                      pl.ds((kj * d) // s, wo), :]  # (toh, Wo, Cin); only the row start is dynamic

    if fuse:
        # Cin % 128 == 0: lane-aligned concat -> single (toh*Wo, k*k*Cin) x (k*k*Cin, Cout) matmul.
        taps = [tap(ki, kj) for ki in range(k) for kj in range(k)]
        patches = taps[0] if len(taps) == 1 else jnp.concatenate(taps, axis=-1)
        y = jnp.dot(patches.reshape(toh * wo, k * k * cin), w_ref[...],
                    preferred_element_type=jnp.float32)
    else:
        # Small / unaligned Cin: accumulate k*k full-block matmuls in f32 (no lane relayout).
        y = None
        for ki in range(k):
            for kj in range(k):
                p = jnp.dot(tap(ki, kj).reshape(toh * wo, cin), w_ref[ki * k + kj],
                            preferred_element_type=jnp.float32)
                y = p if y is None else y + p

    o_ref[0, :, :, :] = y.reshape(toh, wo, cout).astype(o_ref.dtype)


def _conv_group(xp, w_k, *, k, d, s, Ho, Wo, toh, fuse, out_dtype):
    N, ss, Hq, Wq, cin = xp.shape
    cout = int(w_k.shape[-1])

    kernel = functools.partial(_cdilated_kernel, k=k, d=d, s=s, toh=toh, wo=Wo,
                               cin=cin, cout=cout, fuse=fuse)

    w_zero_idx = (0,) * w_k.ndim
    limit = _vmem_limit_bytes((1, ss, Hq, Wq, cin), tuple(w_k.shape), (1, toh, Wo, cout))

    return pl.pallas_call(
        kernel,
        out_shape=jax.ShapeDtypeStruct((N, Ho, Wo, cout), out_dtype),
        grid_spec=pltpu.PrefetchScalarGridSpec(
            num_scalar_prefetch=0,
            grid=(N, Ho // toh),
            in_specs=[
                # Whole phase image of batch n; index_map ignores r -> stays resident
                # across the row blocks (no re-DMA between row steps).
                pl.BlockSpec((1, ss, Hq, Wq, cin), lambda n, r: (n, 0, 0, 0, 0)),
                pl.BlockSpec(tuple(w_k.shape), lambda n, r: w_zero_idx),
            ],
            out_specs=pl.BlockSpec((1, toh, Wo, cout), lambda n, r: (n, r, 0, 0)),
        ),
        compiler_params=pltpu.CompilerParams(
            dimension_semantics=("parallel", "parallel"),
            vmem_limit_bytes=limit,
        ),
    )(xp, w_k)


@functools.partial(jax.jit, static_argnames=("stride", "d", "groups"))
def cdilated(x, weight, *, stride=1, d=1, groups=1):
    """CDilated forward. x: NCHW; weight: PyTorch Conv2d layout (Cout, Cin/groups, k, k)."""
    N, Cin, H, W = x.shape
    Cout, cin_g, kH, kW = weight.shape
    assert kH == kW, "square kernels only"
    assert Cin == cin_g * groups and Cout % groups == 0
    k = int(kH)
    s = int(stride)
    pad = ((k - 1) // 2) * d

    # PyTorch output extent.
    Ho = (H + 2 * pad - d * (k - 1) - 1) // s + 1
    Wo = (W + 2 * pad - d * (k - 1) - 1) // s + 1
    assert Ho > 0 and Wo > 0

    Hp, Wp = H + 2 * pad, W + 2 * pad
    Hq, Wq = _cdiv(Hp, s), _cdiv(Wp, s)

    # One NCHW->NHWC transpose (channels on lanes for the MXU contraction) + zero pad
    # (halo pad fused with the round-up-to-stride pad; the extra rows/cols are never read).
    x_nhwc = jnp.transpose(x, (0, 2, 3, 1))
    xp = jnp.pad(x_nhwc, ((0, 0),
                          (pad, pad + (Hq * s - Hp)),
                          (pad, pad + (Wq * s - Wp)),
                          (0, 0)))

    # Stride-phase decomposition: plane p = pr*s + pc holds rows pr::s, cols pc::s.
    # For stride == 1 this is a pure (free) reshape; for stride > 1 it replaces computing
    # the stride-1 conv and decimating (s*s fewer FLOPs and output HBM writes).
    xp = xp.reshape(N, Hq, s, Wq, s, Cin)
    xp = jnp.transpose(xp, (0, 2, 4, 1, 3, 5)).reshape(N, s * s, Hq, Wq, Cin)

    cout_g = Cout // groups
    fuse = (cin_g % 128 == 0)
    toh = _pick_toh(Ho, Wo, cout_g)

    outs = []
    for g in range(groups):
        xg = xp if groups == 1 else xp[..., g * cin_g:(g + 1) * cin_g]
        wg = weight[g * cout_g:(g + 1) * cout_g]               # (cout_g, cin_g, k, k)
        w_t = jnp.transpose(wg, (2, 3, 1, 0))                  # (k, k, cin_g, cout_g), tap-major
        w_k = (w_t.reshape(k * k * cin_g, cout_g) if fuse
               else w_t.reshape(k * k, cin_g, cout_g))
        outs.append(_conv_group(xg, w_k, k=k, d=d, s=s, Ho=Ho, Wo=Wo, toh=toh,
                                fuse=fuse, out_dtype=x.dtype))
    y = outs[0] if groups == 1 else jnp.concatenate(outs, axis=-1)  # NHWC
    return jnp.transpose(y, (0, 3, 1, 2))  # back to NCHW (PyTorch convention)


def _reference(x, weight, *, stride, d, groups):
    k = weight.shape[2]
    pad = ((k - 1) // 2) * d
    return lax.conv_general_dilated(
        x, weight,
        window_strides=(stride, stride),
        padding=[(pad, pad), (pad, pad)],
        rhs_dilation=(d, d),
        dimension_numbers=("NCHW", "OIHW", "NCHW"),
        feature_group_count=groups,
        precision=lax.Precision.HIGHEST)


if __name__ == "__main__":
    key = jax.random.PRNGKey(0)
    keys = jax.random.split(key, 4)

    # (x shape, nOut, kSize, stride, d, groups)
    cases = [
        ((2, 4, 16, 16), 8, 3, 1, 2, 1),    # classic dilated branch
        ((2, 4, 16, 16), 8, 3, 1, 1, 2),    # grouped conv
        ((2, 4, 16, 16), 8, 3, 2, 1, 1),    # strided conv (stride folded in-kernel)
        ((1, 128, 8, 8), 16, 3, 1, 1, 1),   # lane-aligned Cin -> fused single-matmul path
    ]
    for i, (xshape, nOut, ksz, stride, dil, groups) in enumerate(cases):
        kx, kw = jax.random.split(keys[i], 2)
        x = jax.random.normal(kx, xshape, jnp.float32)
        w = 0.1 * jax.random.normal(kw, (nOut, xshape[1] // groups, ksz, ksz), jnp.float32)

        out = jax.block_until_ready(cdilated(x, w, stride=stride, d=dil, groups=groups))
        ref = _reference(x, w, stride=stride, d=dil, groups=groups)

        assert out.shape == ref.shape, (out.shape, ref.shape)
        # Default (bf16-pass) MXU precision vs HIGHEST-precision reference: allow an
        # error budget that scales with the contraction length.
        kdim = ksz * ksz * (xshape[1] // groups)
        tol = 2e-2 * float(jnp.max(jnp.abs(ref))) + 2e-3 * (kdim ** 0.5)
        err = float(jnp.max(jnp.abs(out - ref)))
        assert err <= tol, (
            f"mismatch vs reference for case {i}: "
            f"nOut={nOut} k={ksz} stride={stride} d={dil} g={groups} err={err} tol={tol}")
    print("KERNEL_OK")
</pallas_src>

<mosaic_0001>
module attributes {stable_mosaic.version = 11 : i64} {
  func.func @_cdilated_kernel(%arg0: i32, %arg1: i32, %arg2: memref<1x1x20x20x4xf32, #tpu.memory_space<vmem>>, %arg3: memref<9x4x8xf32, #tpu.memory_space<vmem>>, %arg4: memref<1x8x16x8xf32, #tpu.memory_space<vmem>>) attributes {dimension_semantics = [#tpu.dimension_semantics<parallel>, #tpu.dimension_semantics<parallel>], iteration_bounds = array<i64: 2, 2>, scalar_prefetch = 0 : i64, scratch_operands = 0 : i64, tpu.core_type = #tpu.core_type<tc>, window_params = [{transform_indices = @transform_0, window_bounds = array<i64: 1, 1, 20, 20, 4>}, {pipeline_mode = #tpu.pipeline_mode<synchronous>, transform_indices = @transform_1, window_bounds = array<i64: 9, 4, 8>}, {transform_indices = @transform_2, window_bounds = array<i64: 1, 8, 16, 8>}]} {
    %c8_i32 = arith.constant 8 : i32
    %0 = arith.muli %arg1, %c8_i32 : i32
    %c0_i32 = arith.constant 0 : i32
    %1 = arith.addi %0, %c0_i32 : i32
    %c0 = arith.constant 0 : index
    %c0_0 = arith.constant 0 : index
    %2 = arith.index_cast %1 : i32 to index
    %c0_1 = arith.constant 0 : index
    %c0_2 = arith.constant 0 : index
    %3 = vector.load %arg2[%c0, %c0_0, %2, %c0_1, %c0_2] : memref<1x1x20x20x4xf32, #tpu.memory_space<vmem>>, vector<1x1x8x16x4xf32>
    %4 = vector.shape_cast %3 : vector<1x1x8x16x4xf32> to vector<8x16x4xf32>
    %5 = vector.shape_cast %4 : vector<8x16x4xf32> to vector<128x4xf32>
    %c0_3 = arith.constant 0 : index
    %c0_4 = arith.constant 0 : index
    %c0_5 = arith.constant 0 : index
    %6 = vector.load %arg3[%c0_3, %c0_4, %c0_5] : memref<9x4x8xf32, #tpu.memory_space<vmem>>, vector<1x4x8xf32>
    %7 = vector.shape_cast %6 : vector<1x4x8xf32> to vector<4x8xf32>
    %cst = arith.constant dense<0.000000e+00> : vector<128x8xf32>
    %8 = tpu.matmul %5, %7, %cst {dimension_numbers = #tpu.dot_dimension_numbers<[1], [0], [0], [1], [0, 0, 1, 1], [], []>} : vector<128x4xf32>, vector<4x8xf32>, vector<128x8xf32> -> vector<128x8xf32>
    %c0_i32_6 = arith.constant 0 : i32
    %9 = arith.addi %0, %c0_i32_6 : i32
    %c0_7 = arith.constant 0 : index
    %c0_8 = arith.constant 0 : index
    %10 = arith.index_cast %9 : i32 to index
    %c2 = arith.constant 2 : index
    %c0_9 = arith.constant 0 : index
    %11 = vector.load %arg2[%c0_7, %c0_8, %10, %c2, %c0_9] : memref<1x1x20x20x4xf32, #tpu.memory_space<vmem>>, vector<1x1x8x16x4xf32>
    %12 = vector.shape_cast %11 : vector<1x1x8x16x4xf32> to vector<8x16x4xf32>
    %13 = vector.shape_cast %12 : vector<8x16x4xf32> to vector<128x4xf32>
    %c1 = arith.constant 1 : index
    %c0_10 = arith.constant 0 : index
    %c0_11 = arith.constant 0 : index
    %14 = vector.load %arg3[%c1, %c0_10, %c0_11] : memref<9x4x8xf32, #tpu.memory_space<vmem>>, vector<1x4x8xf32>
    %15 = vector.shape_cast %14 : vector<1x4x8xf32> to vector<4x8xf32>
    %cst_12 = arith.constant dense<0.000000e+00> : vector<128x8xf32>
    %16 = tpu.matmul %13, %15, %cst_12 {dimension_numbers = #tpu.dot_dimension_numbers<[1], [0], [0], [1], [0, 0, 1, 1], [], []>} : vector<128x4xf32>, vector<4x8xf32>, vector<128x8xf32> -> vector<128x8xf32>
    %17 = arith.addf %8, %16 : vector<128x8xf32>
    %c0_i32_13 = arith.constant 0 : i32
    %18 = arith.addi %0, %c0_i32_13 : i32
    %c0_14 = arith.constant 0 : index
    %c0_15 = arith.constant 0 : index
    %19 = arith.index_cast %18 : i32 to index
    %c4 = arith.constant 4 : index
    %c0_16 = arith.constant 0 : index
    %20 = vector.load %arg2[%c0_14, %c0_15, %19, %c4, %c0_16] : memref<1x1x20x20x4xf32, #tpu.memory_space<vmem>>, vector<1x1x8x16x4xf32>
    %21 = vector.shape_cast %20 : vector<1x1x8x16x4xf32> to vector<8x16x4xf32>
    %22 = vector.shape_cast %21 : vector<8x16x4xf32> to vector<128x4xf32>
    %c2_17 = arith.constant 2 : index
    %c0_18 = arith.constant 0 : index
    %c0_19 = arith.constant 0 : index
    %23 = vector.load %arg3[%c2_17, %c0_18, %c0_19] : memref<9x4x8xf32, #tpu.memory_space<vmem>>, vector<1x4x8xf32>
    %24 = vector.shape_cast %23 : vector<1x4x8xf32> to vector<4x8xf32>
    %cst_20 = arith.constant dense<0.000000e+00> : vector<128x8xf32>
    %25 = tpu.matmul %22, %24, %cst_20 {dimension_numbers = #tpu.dot_dimension_numbers<[1], [0], [0], [1], [0, 0, 1, 1], [], []>} : vector<128x4xf32>, vector<4x8xf32>, vector<128x8xf32> -> vector<128x8xf32>
    %26 = arith.addf %17, %25 : vector<128x8xf32>
    %c2_i32 = arith.constant 2 : i32
    %27 = arith.addi %0, %c2_i32 : i32
    %c0_21 = arith.constant 0 : index
    %c0_22 = arith.constant 0 : index
    %28 = arith.index_cast %27 : i32 to index
    %c0_23 = arith.constant 0 : index
    %c0_24 = arith.constant 0 : index
    %29 = vector.load %arg2[%c0_21, %c0_22, %28, %c0_23, %c0_24] : memref<1x1x20x20x4xf32, #tpu.memory_space<vmem>>, vector<1x1x8x16x4xf32>
    %30 = vector.shape_cast %29 : vector<1x1x8x16x4xf32> to vector<8x16x4xf32>
    %31 = vector.shape_cast %30 : vector<8x16x4xf32> to vector<128x4xf32>
    %c3 = arith.constant 3 : index
    %c0_25 = arith.constant 0 : index
    %c0_26 = arith.constant 0 : index
    %32 = vector.load %arg3[%c3, %c0_25, %c0_26] : memref<9x4x8xf32, #tpu.memory_space<vmem>>, vector<1x4x8xf32>
    %33 = vector.shape_cast %32 : vector<1x4x8xf32> to vector<4x8xf32>
    %cst_27 = arith.constant dense<0.000000e+00> : vector<128x8xf32>
    %34 = tpu.matmul %31, %33, %cst_27 {dimension_numbers = #tpu.dot_dimension_numbers<[1], [0], [0], [1], [0, 0, 1, 1], [], []>} : vector<128x4xf32>, vector<4x8xf32>, vector<128x8xf32> -> vector<128x8xf32>
    %35 = arith.addf %26, %34 : vector<128x8xf32>
    %c2_i32_28 = arith.constant 2 : i32
    %36 = arith.addi %0, %c2_i32_28 : i32
    %c0_29 = arith.constant 0 : index
    %c0_30 = arith.constant 0 : index
    %37 = arith.index_cast %36 : i32 to index
    %c2_31 = arith.constant 2 : index
    %c0_32 = arith.constant 0 : index
    %38 = vector.load %arg2[%c0_29, %c0_30, %37, %c2_31, %c0_32] : memref<1x1x20x20x4xf32, #tpu.memory_space<vmem>>, vector<1x1x8x16x4xf32>
    %39 = vector.shape_cast %38 : vector<1x1x8x16x4xf32> to vector<8x16x4xf32>
    %40 = vector.shape_cast %39 : vector<8x16x4xf32> to vector<128x4xf32>
    %c4_33 = arith.constant 4 : index
    %c0_34 = arith.constant 0 : index
    %c0_35 = arith.constant 0 : index
    %41 = vector.load %arg3[%c4_33, %c0_34, %c0_35] : memref<9x4x8xf32, #tpu.memory_space<vmem>>, vector<1x4x8xf32>
    %42 = vector.shape_cast %41 : vector<1x4x8xf32> to vector<4x8xf32>
    %cst_36 = arith.constant dense<0.000000e+00> : vector<128x8xf32>
    %43 = tpu.matmul %40, %42, %cst_36 {dimension_numbers = #tpu.dot_dimension_numbers<[1], [0], [0], [1], [0, 0, 1, 1], [], []>} : vector<128x4xf32>, vector<4x8xf32>, vector<128x8xf32> -> vector<128x8xf32>
    %44 = arith.addf %35, %43 : vector<128x8xf32>
    %c2_i32_37 = arith.constant 2 : i32
    %45 = arith.addi %0, %c2_i32_37 : i32
    %c0_38 = arith.constant 0 : index
    %c0_39 = arith.constant 0 : index
    %46 = arith.index_cast %45 : i32 to index
    %c4_40 = arith.constant 4 : index
    %c0_41 = arith.constant 0 : index
    %47 = vector.load %arg2[%c0_38, %c0_39, %46, %c4_40, %c0_41] : memref<1x1x20x20x4xf32, #tpu.memory_space<vmem>>, vector<1x1x8x16x4xf32>
    %48 = vector.shape_cast %47 : vector<1x1x8x16x4xf32> to vector<8x16x4xf32>
    %49 = vector.shape_cast %48 : vector<8x16x4xf32> to vector<128x4xf32>
    %c5 = arith.constant 5 : index
    %c0_42 = arith.constant 0 : index
    %c0_43 = arith.constant 0 : index
    %50 = vector.load %arg3[%c5, %c0_42, %c0_43] : memref<9x4x8xf32, #tpu.memory_space<vmem>>, vector<1x4x8xf32>
    %51 = vector.shape_cast %50 : vector<1x4x8xf32> to vector<4x8xf32>
    %cst_44 = arith.constant dense<0.000000e+00> : vector<128x8xf32>
    %52 = tpu.matmul %49, %51, %cst_44 {dimension_numbers = #tpu.dot_dimension_numbers<[1], [0], [0], [1], [0, 0, 1, 1], [], []>} : vector<128x4xf32>, vector<4x8xf32>, vector<128x8xf32> -> vector<128x8xf32>
    %53 = arith.addf %44, %52 : vector<128x8xf32>
    %c4_i32 = arith.constant 4 : i32
    %54 = arith.addi %0, %c4_i32 : i32
    %c0_45 = arith.constant 0 : index
    %c0_46 = arith.constant 0 : index
    %55 = arith.index_cast %54 : i32 to index
    %c0_47 = arith.constant 0 : index
    %c0_48 = arith.constant 0 : index
    %56 = vector.load %arg2[%c0_45, %c0_46, %55, %c0_47, %c0_48] : memref<1x1x20x20x4xf32, #tpu.memory_space<vmem>>, vector<1x1x8x16x4xf32>
    %57 = vector.shape_cast %56 : vector<1x1x8x16x4xf32> to vector<8x16x4xf32>
    %58 = vector.shape_cast %57 : vector<8x16x4xf32> to vector<128x4xf32>
    %c6 = arith.constant 6 : index
    %c0_49 = arith.constant 0 : index
    %c0_50 = arith.constant 0 : index
    %59 = vector.load %arg3[%c6, %c0_49, %c0_50] : memref<9x4x8xf32, #tpu.memory_space<vmem>>, vector<1x4x8xf32>
    %60 = vector.shape_cast %59 : vector<1x4x8xf32> to vector<4x8xf32>
    %cst_51 = arith.constant dense<0.000000e+00> : vector<128x8xf32>
    %61 = tpu.matmul %58, %60, %cst_51 {dimension_numbers = #tpu.dot_dimension_numbers<[1], [0], [0], [1], [0, 0, 1, 1], [], []>} : vector<128x4xf32>, vector<4x8xf32>, vector<128x8xf32> -> vector<128x8xf32>
    %62 = arith.addf %53, %61 : vector<128x8xf32>
    %c4_i32_52 = arith.constant 4 : i32
    %63 = arith.addi %0, %c4_i32_52 : i32
    %c0_53 = arith.constant 0 : index
    %c0_54 = arith.constant 0 : index
    %64 = arith.index_cast %63 : i32 to index
    %c2_55 = arith.constant 2 : index
    %c0_56 = arith.constant 0 : index
    %65 = vector.load %arg2[%c0_53, %c0_54, %64, %c2_55, %c0_56] : memref<1x1x20x20x4xf32, #tpu.memory_space<vmem>>, vector<1x1x8x16x4xf32>
    %66 = vector.shape_cast %65 : vector<1x1x8x16x4xf32> to vector<8x16x4xf32>
    %67 = vector.shape_cast %66 : vector<8x16x4xf32> to vector<128x4xf32>
    %c7 = arith.constant 7 : index
    %c0_57 = arith.constant 0 : index
    %c0_58 = arith.constant 0 : index
    %68 = vector.load %arg3[%c7, %c0_57, %c0_58] : memref<9x4x8xf32, #tpu.memory_space<vmem>>, vector<1x4x8xf32>
    %69 = vector.shape_cast %68 : vector<1x4x8xf32> to vector<4x8xf32>
    %cst_59 = arith.constant dense<0.000000e+00> : vector<128x8xf32>
    %70 = tpu.matmul %67, %69, %cst_59 {dimension_numbers = #tpu.dot_dimension_numbers<[1], [0], [0], [1], [0, 0, 1, 1], [], []>} : vector<128x4xf32>, vector<4x8xf32>, vector<128x8xf32> -> vector<128x8xf32>
    %71 = arith.addf %62, %70 : vector<128x8xf32>
    %c4_i32_60 = arith.constant 4 : i32
    %72 = arith.addi %0, %c4_i32_60 : i32
    %c0_61 = arith.constant 0 : index
    %c0_62 = arith.constant 0 : index
    %73 = arith.index_cast %72 : i32 to index
    %c4_63 = arith.constant 4 : index
    %c0_64 = arith.constant 0 : index
    %74 = vector.load %arg2[%c0_61, %c0_62, %73, %c4_63, %c0_64] : memref<1x1x20x20x4xf32, #tpu.memory_space<vmem>>, vector<1x1x8x16x4xf32>
    %75 = vector.shape_cast %74 : vector<1x1x8x16x4xf32> to vector<8x16x4xf32>
    %76 = vector.shape_cast %75 : vector<8x16x4xf32> to vector<128x4xf32>
    %c8 = arith.constant 8 : index
    %c0_65 = arith.constant 0 : index
    %c0_66 = arith.constant 0 : index
    %77 = vector.load %arg3[%c8, %c0_65, %c0_66] : memref<9x4x8xf32, #tpu.memory_space<vmem>>, vector<1x4x8xf32>
    %78 = vector.shape_cast %77 : vector<1x4x8xf32> to vector<4x8xf32>
    %cst_67 = arith.constant dense<0.000000e+00> : vector<128x8xf32>
    %79 = tpu.matmul %76, %78, %cst_67 {dimension_numbers = #tpu.dot_dimension_numbers<[1], [0], [0], [1], [0, 0, 1, 1], [], []>} : vector<128x4xf32>, vector<4x8xf32>, vector<128x8xf32> -> vector<128x8xf32>
    %80 = arith.addf %71, %79 : vector<128x8xf32>
    %81 = vector.shape_cast %80 : vector<128x8xf32> to vector<8x16x8xf32>
    %c0_68 = arith.constant 0 : index
    %c0_69 = arith.constant 0 : index
    %c0_70 = arith.constant 0 : index
    %c0_71 = arith.constant 0 : index
    %82 = vector.load %arg4[%c0_68, %c0_69, %c0_70, %c0_71] : memref<1x8x16x8xf32, #tpu.memory_space<vmem>>, vector<1x8x16x8xf32>
    %83 = vector.shape_cast %82 : vector<1x8x16x8xf32> to vector<8x16x8xf32>
    %84 = vector.shape_cast %81 : vector<8x16x8xf32> to vector<1x8x16x8xf32>
    tpu.vector_store %arg4[%c0_68, %c0_69, %c0_70, %c0_71], %84 {strides = array<i32>} : memref<1x8x16x8xf32, #tpu.memory_space<vmem>>, vector<1x8x16x8xf32>,
    return
  }
  func.func @transform_0(%arg0: i32, %arg1: i32) -> (i32, i32, i32, i32, i32) {
    %c0_i32 = arith.constant 0 : i32
    %c0_i32_0 = arith.constant 0 : i32
    %c0_i32_1 = arith.constant 0 : i32
    %c0_i32_2 = arith.constant 0 : i32
    %c0_i32_3 = arith.constant 0 : i32
    return %arg0, %c0_i32, %c0_i32_0, %c0_i32_1, %c0_i32_2 : i32, i32, i32, i32, i32
  }
  func.func @transform_1(%arg0: i32, %arg1: i32) -> (i32, i32, i32) {
    %c0_i32 = arith.constant 0 : i32
    %c0_i32_0 = arith.constant 0 : i32
    %c0_i32_1 = arith.constant 0 : i32
    %c0_i32_2 = arith.constant 0 : i32
    return %c0_i32, %c0_i32_0, %c0_i32_1 : i32, i32, i32
  }
  func.func @transform_2(%arg0: i32, %arg1: i32) -> (i32, i32, i32, i32) {
    %c0_i32 = arith.constant 0 : i32
    %c0_i32_0 = arith.constant 0 : i32
    %c0_i32_1 = arith.constant 0 : i32
    return %arg0, %arg1, %c0_i32, %c0_i32_0 : i32, i32, i32, i32
  }
}

</mosaic_0001>

<llo_original>
// kernel: cdilated.1
$region0: #{cdilated.1}
  #allocation0 [shape = 'u32[]', space=smem, size = 0x4, offset = 0x4, fixed_abs, tag = 'smem constant byte address 0x4 - core index']
  #allocation1 [shape = 'u32[144,128]{1,0:T(1,128)}', space=vmem, size = 0x12000, scoped, tag = 'internal scratch']
  %s0 = inlined_call_operand.vmem [shape: f32[2,1,20,20,4], index: 0, kind: input, shape index: {}]
  %s1 = inlined_call_operand.vmem [shape: f32[9,4,8], index: 1, kind: input, shape index: {}]
  %s2 = inlined_call_operand.vmem [shape: f32[2,16,16,8], index: 2, kind: output, shape index: {}]
  %s3 = sld [smem:[#allocation0]]
  $region41: #{cdilated.1} parent=0
    _
  %s5 = ssub.s32 1, %s3
  %s6 = scalar_select 0, %s5, %s3
  loop: start=0, step=1, limit=6
  $region2: #{cdilated.1} parent=0 // loop_pre_header
    _
  $region3: #{cdilated.1} parent=0 // loop_header
    %s8 = sphi 0, %s12
    %p9 = scmp.ge.s32.totalorder %s8, 6
    %s15 = sphi 0, %s27
    %s16 = sphi 0, %s23
    %s17 = sphi 0, %s15
    %s18 = sphi 0, %s16
    %s19 = sphi 0, %s17
    %s20 = sphi 0, %s18
    %s30 = sphi 0, %s32
    %s33 = sphi 0, %s30
    %s34 = sphi 0, %s33
    %s50 = sphi 0, %s34
    %s54 = sphi 0, %s54
    %s56 = sphi 0, %s54
    %s57 = sphi 0, %s56
    %s71 = sphi 0, %s57
    %s79 = sphi 0, %s81
    %s82 = sphi 0, %s79
    %s83 = sphi 0, %s82
    %s99 = sphi 0, %s83
  $region4: #{cdilated.1} parent=0 // loop_header_branch
    %11 = sbr.rel (%p9) target = $region8
  $region5: #{cdilated.1} parent=0 // loop_body
    %s13 = ssub.s32 %s8, 1
    %s14 = ssub.s32 %s8, 2
    %s21 = sadd.s32 1, %s16
    %p22 = scmp.ge.s32.totalorder %s21, 2
    %s23 = scalar_select %p22, 0, %s21
    %s24 = sadd.s32 1, %s15
    %s25 = scalar_select %p22, %s24, %s15
    %p26 = scmp.ge.s32.totalorder %s25, 2
    %s27 = scalar_select %p26, 0, %s25
    %s28 = ssub.s32 %s15, %s27
    %p29 = scmp.eq.s32.totalorder %s28, 0
    %s31 = sadd.s32 %s30, 1
    %s32 = scalar_select %p29, %s30, %s31
    %p35 = pneg %p29
    %p36 = scmp.eq.s32.totalorder %s8, 3
    %p37 = por %p35, %p36
    %p38 = scmp.ne.s32.totalorder %s30, %s33
    %p39 = scmp.eq.s32.totalorder %s8, 0
    %p40 = por %p38, %p39
    %p41 = scmp.ne.s32.totalorder %s30, %s33
    %p42 = scmp.eq.s32.totalorder %s13, 3
    %p43 = por %p41, %p42
    %p44 = scmp.ne.s32.totalorder %s33, %s34
    %p45 = scmp.eq.s32.totalorder %s13, 0
    %p46 = por %p44, %p45
    %p47 = scmp.ne.s32.totalorder %s33, %s34
    %p48 = scmp.eq.s32.totalorder %s14, 3
    %p49 = por %p47, %p48
    %p51 = scmp.ne.s32.totalorder %s34, %s50
    %p52 = scmp.eq.s32.totalorder %s14, 0
    %p53 = por %p51, %p52
    %s55 = sadd.s32 %s54, 1
    %p58 = scmp.eq.s32.totalorder %s8, 3
    %p59 = scmp.ne.s32.totalorder %s54, %s56
    %p60 = scmp.eq.s32.totalorder %s8, 0
    %p61 = por %p59, %p60
    %p62 = scmp.ne.s32.totalorder %s54, %s56
    %p63 = scmp.eq.s32.totalorder %s13, 3
    %p64 = por %p62, %p63
    %p65 = scmp.ne.s32.totalorder %s56, %s57
    %p66 = scmp.eq.s32.totalorder %s13, 0
    %p67 = por %p65, %p66
    %p68 = scmp.ne.s32.totalorder %s56, %s57
    %p69 = scmp.eq.s32.totalorder %s14, 3
    %p70 = por %p68, %p69
    %p72 = scmp.ne.s32.totalorder %s57, %s71
    %p73 = scmp.eq.s32.totalorder %s14, 0
    %p74 = por %p72, %p73
    %s75 = ssub.s32 %s15, %s27
    %s76 = ssub.s32 %s16, %s23
    %s77 = sor.u32 %s75, %s76
    %p78 = scmp.eq.s32.totalorder %s77, 0
    %s80 = sadd.s32 %s79, 1
    %s81 = scalar_select %p78, %s79, %s80
    %p84 = pneg %p78
    %p85 = scmp.eq.s32.totalorder %s8, 3
    %p86 = por %p84, %p85
    %p87 = scmp.ne.s32.totalorder %s79, %s82
    %p88 = scmp.eq.s32.totalorder %s8, 0
    %p89 = por %p87, %p88
    %p90 = scmp.ne.s32.totalorder %s79, %s82
    %p91 = scmp.eq.s32.totalorder %s13, 3
    %p92 = por %p90, %p91
    %p93 = scmp.ne.s32.totalorder %s82, %s83
    %p94 = scmp.eq.s32.totalorder %s13, 0
    %p95 = por %p93, %p94
    %p96 = scmp.ne.s32.totalorder %s82, %s83
    %p97 = scmp.eq.s32.totalorder %s14, 3
    %p98 = por %p96, %p97
    %p100 = scmp.ne.s32.totalorder %s83, %s99
    %p101 = scmp.eq.s32.totalorder %s14, 0
    %p102 = por %p100, %p101
    %p103 = scmp.le.s32.totalorder 1, %s8
    %p104 = scmp.lt.s32.totalorder %s8, 5
    %p105 = pnand %p103, %p104
    %p106 = pneg %p105
    // Predicated region
    $region9: #{cdilated.1} parent=5 // pred_check
      _
    $region10: #{cdilated.1} parent=5 // pred_check_branch
      %108 = sbr.rel (%p105) target = $region12
    $region11: #{cdilated.1} parent=5 // pred_region
      %s109 = ssub.s32 %s8, 1
      // Predicated region
      $region13: #{cdilated.1} parent=11 // pred_check
        %p110 = pneg %p67
      $region14: #{cdilated.1} parent=11 // pred_check_branch
        %112 = sbr.rel (%p110) target = $region16
      $region15: #{cdilated.1} parent=11 // pred_region
        _
      $region16: #{cdilated.1} parent=11 // pred_fallthru
        _
    $region12: #{cdilated.1} parent=5 // pred_fallthru
      _
    %p113 = scmp.lt.s32.totalorder %s8, 4
    // Predicated region
    $region17: #{cdilated.1} parent=5 // pred_check
      %p114 = pneg %p113
    $region18: #{cdilated.1} parent=5 // pred_check_branch
      %116 = sbr.rel (%p114) target = $region20
    $region19: #{cdilated.1} parent=5 // pred_region
      // Predicated region
      $region21: #{cdilated.1} parent=19 // pred_check
        %p117 = pneg %p40
      $region22: #{cdilated.1} parent=19 // pred_check_branch
        %119 = sbr.rel (%p117) target = $region24
      $region23: #{cdilated.1} parent=19 // pred_region
        %p120 = scmp.lt.s32.totalorder %s15, 1
        %s121 = scalar_select %p120, %s15, 1
        %s122 = smul.addr %s121, 60
        %s123 = smul.addr %s122, 8
        %s124 = scalar_lea.vmem %s0, %s123
      $region24: #{cdilated.1} parent=19 // pred_fallthru
        _
    $region20: #{cdilated.1} parent=5 // pred_fallthru
      _
    %p125 = scmp.le.s32.totalorder 1, %s8
    %p126 = scmp.lt.s32.totalorder %s8, 5
    %p127 = pnand %p125, %p126
    %p128 = pneg %p127
    // Predicated region
    $region25: #{cdilated.1} parent=5 // pred_check
      _
    $region26: #{cdilated.1} parent=5 // pred_check_branch
      %130 = sbr.rel (%p127) target = $region28
    $region27: #{cdilated.1} parent=5 // pred_region
      %s131 = ssub.s32 %s8, 1
      %p132 = scmp.lt.s32.totalorder %s17, 1
      %s133 = scalar_select %p132, %s17, 1
      %s134 = smul.addr %s133, 60
      %s135 = smul.addr %s134, 8
      %s136 = scalar_lea.vmem %s0, %s135
      %p137 = pneg %p46
      %p138 = pneg %p43
      %p139 = pneg %p67
      %p140 = pneg %p64
      %p141 = pneg %p95
      %p142 = pneg %p92
      %s143 = smul.u32 8, %s18
      %p144 = scmp.lt.s32.totalorder %s17, 1
      %s145 = scalar_select %p144, %s17, 1
      %p146 = scmp.lt.s32.totalorder %s143, 15
      %s147 = scalar_select %p146, %s143, 15
      %s148 = smul.addr %s147, 2
      %s149 = smul.addr %s145, 32
      %s150 = sadd.s32 %s148, %s149
      %s151 = smul.addr %s150, 8
      %s152 = scalar_lea.vmem %s2, %s151
      %p153 = scmp.lt.s32.totalorder %s17, 1
      %s154 = scalar_select %p153, %s17, 1
      %s155 = smul.addr %s154, 60
      %s156 = smul.addr %s155, 8
      %s157 = scalar_lea.vmem %s0, %s156
      %s158 = smul.u32 8, %s18
      %p159 = scmp.lt.s32.totalorder %s17, 1
      %s160 = scalar_select %p159, %s17, 1
      %p161 = scmp.lt.s32.totalorder %s158, 15
      %s162 = scalar_select %p161, %s158, 15
      %s163 = smul.addr %s162, 2
      %s164 = smul.addr %s160, 32
      %s165 = sadd.s32 %s163, %s164
      %s166 = smul.addr %s165, 8
      %s167 = scalar_lea.vmem %s2, %s166
      %s168 = smul.u32 8, %s18
      %s169 = smul.u32 %s18, 8
      %s170 = smul.u32 %s169, 24
      %s171 = scalar_lea.vmem %s157, %s170
      %v172 = vld [vmem:[%s171] sm:$0xff]
      %v173 = vld [vmem:[%s171 + $0x8] sm:$0xff]
      %v174 = vld [vmem:[%s171 + $0x18] sm:$0xff]
      %v175 = vld [vmem:[%s171 + $0x20] sm:$0xff]
      %v176 = vld [vmem:[%s171 + $0x30] sm:$0xff]
      %v177 = vld [vmem:[%s171 + $0x38] sm:$0xff]
      %v178 = vld [vmem:[%s171 + $0x48] sm:$0xff]
      %v179 = vld [vmem:[%s171 + $0x50] sm:$0xff]
      %v180 = vld [vmem:[%s171 + $0x60] sm:$0xff]
      %v181 = vld [vmem:[%s171 + $0x68] sm:$0xff]
      %v182 = vld [vmem:[%s171 + $0x78] sm:$0xff]
      %v183 = vld [vmem:[%s171 + $0x80] sm:$0xff]
      %v184 = vld [vmem:[%s171 + $0x90] sm:$0xff]
      %v185 = vld [vmem:[%s171 + $0x98] sm:$0xff]
      %v186 = vld [vmem:[%s171 + $0xa8] sm:$0xff]
      %v187 = vld [vmem:[%s171 + $0xb0] sm:$0xff]
      %v188 = vld [vmem:[%s1] sm:$0xf]
      %v189 = vld [vmem:[%s171 + $0x2] sm:$0xff]
      %v190 = vld [vmem:[%s171 + $0xa] sm:$0xff]
      %v191 = vld [vmem:[%s171 + $0x1a] sm:$0xff]
      %v192 = vld [vmem:[%s171 + $0x22] sm:$0xff]
      %v193 = vld [vmem:[%s171 + $0x32] sm:$0xff]
      %v194 = vld [vmem:[%s171 + $0x3a] sm:$0xff]
      %v195 = vld [vmem:[%s171 + $0x4a] sm:$0xff]
      %v196 = vld [vmem:[%s171 + $0x52] sm:$0xff]
      %v197 = vld [vmem:[%s171 + $0x62] sm:$0xff]
      %v198 = vld [vmem:[%s171 + $0x6a] sm:$0xff]
      %v199 = vld [vmem:[%s171 + $0x7a] sm:$0xff]
      %v200 = vld [vmem:[%s171 + $0x82] sm:$0xff]
      %v201 = vld [vmem:[%s171 + $0x92] sm:$0xff]
      %v202 = vld [vmem:[%s171 + $0x9a] sm:$0xff]
      %v203 = vld [vmem:[%s171 + $0xaa] sm:$0xff]
      %v204 = vld [vmem:[%s171 + $0xb2] sm:$0xff]
      %s205 = scalar_lea.vmem %s1, 4
      %v206 = vld [vmem:[%s205] sm:$0xf]
      %vm207 = vcmask 31744
      %v209 = vsel %vm207, %v189, 0
      %v212 = vsel %vm207, %v190, 0
      %v215 = vsel %vm207, %v191, 0
      %v218 = vsel %vm207, %v192, 0
      %v221 = vsel %vm207, %v193, 0
      %v224 = vsel %vm207, %v194, 0
      %v227 = vsel %vm207, %v195, 0
      %v230 = vsel %vm207, %v196, 0
      %v233 = vsel %vm207, %v197, 0
      %v236 = vsel %vm207, %v198, 0
      %v239 = vsel %vm207, %v199, 0
      %v242 = vsel %vm207, %v200, 0
      %v245 = vsel %vm207, %v201, 0
      %v248 = vsel %vm207, %v202, 0
      %v251 = vsel %vm207, %v203, 0
      %v254 = vsel %vm207, %v204, 0
      %vm256 = vcmask 1043456
      %v258 = vsel %vm256, %v206, 0
      %260 = vmatprep.subr.mxu0 0.0
      %261 = vmatpush1.msra.mxu0 %v258
      %262 = vmatprep.subr.mxu0 0.0
      %263 = vmatpush1.msra.mxu0 0.0
      %264 = vmatprep.subr.mxu0 0.0
      %265 = vmatpush1.msra.mxu0 0.0
      %266 = vmatprep.subr.mxu0 0.0
      %267 = vmatpush1.msra.mxu0 0.0
      %268 = vmatprep.subr.mxu0 0.0
      %269 = vmatpush1.msra.mxu0 0.0
      %270 = vmatprep.subr.mxu0 0.0
      %271 = vmatpush1.msra.mxu0 0.0
      %272 = vmatprep.subr.mxu0 0.0
      %273 = vmatpush1.msra.mxu0 0.0
      %274 = vmatprep.subr.mxu0 0.0
      %275 = vmatpush1.msra.mxu0 0.0
      %276 = vmatprep.subr.mxu0 0.0
      %277 = vmatpush1.msra.mxu0 0.0
      %278 = vmatprep.subr.mxu0 0.0
      %279 = vmatpush1.msra.mxu0 0.0
      %280 = vmatprep.subr.mxu0 0.0
      %281 = vmatpush1.msra.mxu0 0.0
      %282 = vmatprep.subr.mxu0 0.0
      %283 = vmatpush1.msra.mxu0 0.0
      %284 = vmatprep.subr.mxu0 0.0
      %285 = vmatpush1.msra.mxu0 0.0
      %286 = vmatprep.subr.mxu0 0.0
      %287 = vmatpush1.msra.mxu0 0.0
      %288 = vmatprep.subr.mxu0 0.0
      %289 = vmatpush1.msra.mxu0 0.0
      %290 = vmatprep.subr.mxu0 0.0
      %291 = vmatpush1.msra.mxu0 0.0
      %292 = vmatprep.subr.mxu0 0.0
      %293 = vmatpush1.msra.mxu0 0.0
      %294 = vmatprep.subr.mxu0 0.0
      %295 = vmatpush1.msra.mxu0 0.0
      %296 = vmatprep.subr.mxu0 0.0
      %297 = vmatpush1.msra.mxu0 0.0
      %298 = vmatprep.subr.mxu0 0.0
      %299 = vmatpush1.msra.mxu0 0.0
      %300 = vmatprep.subr.mxu0 0.0
      %301 = vmatpush1.msra.mxu0 0.0
      %302 = vmatprep.subr.mxu0 0.0
      %303 = vmatpush1.msra.mxu0 0.0
      %304 = vmatprep.subr.mxu0 0.0
      %305 = vmatpush1.msra.mxu0 0.0
      %306 = vmatprep.subr.mxu0 0.0
      %307 = vmatpush1.msra.mxu0 0.0
      %308 = vmatprep.subr.mxu0 0.0
      %309 = vmatpush1.msra.mxu0 0.0
      %310 = vmatprep.subr.mxu0 0.0
      %311 = vmatpush1.msra.mxu0 0.0
      %312 = vmatprep.subr.mxu0 0.0
      %313 = vmatpush1.msra.mxu0 0.0
      %314 = vmatprep.subr.mxu0 0.0
      %315 = vmatpush1.msra.mxu0 0.0
      %316 = vmatprep.subr.mxu0 0.0
      %317 = vmatpush1.msra.mxu0 0.0
      %318 = vmatprep.subr.mxu0 0.0
      %319 = vmatpush1.msra.mxu0 0.0
      %320 = vmatprep.subr.mxu0 0.0
      %321 = vmatpush1.msra.mxu0 0.0
      %322 = vmatprep.subr.mxu0 0.0
      %323 = vmatpush1.msra.mxu0 0.0
      %324 = vmatprep.mubr.f32.mxu0 0.0
      %325 = vmatmul.mubr.f32.gmra.mrb[0].mxu0 %v209
      %v326 = vpop.f32.mrb[0].mxu0
      %v327 = vadd.f32 0.0, %v326
      %v328 = vpop.f32.mrb[0].mxu0
      %329 = vmatprep.mubr.f32.mxu0 0.0
      %330 = vmatmul.mubr.f32.gmra.mrb[0].mxu0 %v212
      %v331 = vpop.f32.mrb[0].mxu0
      %v332 = vadd.f32 0.0, %v331
      %v333 = vpop.f32.mrb[0].mxu0
      %334 = vmatprep.mubr.f32.mxu0 0.0
      %335 = vmatmul.mubr.f32.gmra.mrb[0].mxu0 %v215
      %v336 = vpop.f32.mrb[0].mxu0
      %v337 = vadd.f32 0.0, %v336
      %v338 = vpop.f32.mrb[0].mxu0
      %339 = vmatprep.mubr.f32.mxu0 0.0
      %340 = vmatmul.mubr.f32.gmra.mrb[0].mxu0 %v218
      %v341 = vpop.f32.mrb[0].mxu0
      %v342 = vadd.f32 0.0, %v341
      %v343 = vpop.f32.mrb[0].mxu0
      %344 = vmatprep.mubr.f32.mxu0 0.0
      %345 = vmatmul.mubr.f32.gmra.mrb[0].mxu0 %v221
      %v346 = vpop.f32.mrb[0].mxu0
      %v347 = vadd.f32 0.0, %v346
      %v348 = vpop.f32.mrb[0].mxu0
      %349 = vmatprep.mubr.f32.mxu0 0.0
      %350 = vmatmul.mubr.f32.gmra.mrb[0].mxu0 %v224
      %v351 = vpop.f32.mrb[0].mxu0
      %v352 = vadd.f32 0.0, %v351
      %v353 = vpop.f32.mrb[0].mxu0
      %354 = vmatprep.mubr.f32.mxu0 0.0
      %355 = vmatmul.mubr.f32.gmra.mrb[0].mxu0 %v227
      %v356 = vpop.f32.mrb[0].mxu0
      %v357 = vadd.f32 0.0, %v356
      %v358 = vpop.f32.mrb[0].mxu0
      %359 = vmatprep.mubr.f32.mxu0 0.0
      %360 = vmatmul.mubr.f32.gmra.mrb[0].mxu0 %v230
      %v361 = vpop.f32.mrb[0].mxu0
      %v362 = vadd.f32 0.0, %v361
      %v363 = vpop.f32.mrb[0].mxu0
      %364 = vmatprep.mubr.f32.mxu0 0.0
      %365 = vmatmul.mubr.f32.gmra.mrb[0].mxu0 %v233
      %v366 = vpop.f32.mrb[0].mxu0
      %v367 = vadd.f32 0.0, %v366
      %v368 = vpop.f32.mrb[0].mxu0
      %369 = vmatprep.mubr.f32.mxu0 0.0
      %370 = vmatmul.mubr.f32.gmra.mrb[0].mxu0 %v236
      %v371 = vpop.f32.mrb[0].mxu0
      %v372 = vadd.f32 0.0, %v371
      %v373 = vpop.f32.mrb[0].mxu0
      %374 = vmatprep.mubr.f32.mxu0 0.0
      %375 = vmatmul.mubr.f32.gmra.mrb[0].mxu0 %v239
      %v376 = vpop.f32.mrb[0].mxu0
      %v377 = vadd.f32 0.0, %v376
      %v378 = vpop.f32.mrb[0].mxu0
      %379 = vmatprep.mubr.f32.mxu0 0.0
      %380 = vmatmul.mubr.f32.gmra.mrb[0].mxu0 %v242
      %v381 = vpop.f32.mrb[0].mxu0
      %v382 = vadd.f32 0.0, %v381
      %v383 = vpop.f32.mrb[0].mxu0
      %384 = vmatprep.mubr.f32.mxu0 0.0
      %385 = vmatmul.mubr.f32.gmra.mrb[0].mxu0 %v245
      %v386 = vpop.f32.mrb[0].mxu0
      %v387 = vadd.f32 0.0, %v386
      %v388 = vpop.f32.mrb[0].mxu0
      %389 = vmatprep.mubr.f32.mxu0 0.0
      %390 = vmatmul.mubr.f32.gmra.mrb[0].mxu0 %v248
      %v391 = vpop.f32.mrb[0].mxu0
      %v392 = vadd.f32 0.0, %v391
      %v393 = vpop.f32.mrb[0].mxu0
      %394 = vmatprep.mubr.f32.mxu0 0.0
      %395 = vmatmul.mubr.f32.gmra.mrb[0].mxu0 %v251
      %v396 = vpop.f32.mrb[0].mxu0
      %v397 = vadd.f32 0.0, %v396
      %v398 = vpop.f32.mrb[0].mxu0
      %399 = vmatprep.mubr.f32.mxu0 0.0
      %400 = vmatmul.mubr.f32.gmra.mrb[0].mxu0 %v254
      %v401 = vpop.f32.mrb[0].mxu0
      %v402 = vadd.f32 0.0, %v401
      %v403 = vpop.f32.mrb[0].mxu0
      %404 = vdwg.mxu0
      %v406 = vsel %vm207, %v172, 0
      %v409 = vsel %vm207, %v173, 0
      %v412 = vsel %vm207, %v174, 0
      %v415 = vsel %vm207, %v175, 0
      %v418 = vsel %vm207, %v176, 0
      %v421 = vsel %vm207, %v177, 0
      %v424 = vsel %vm207, %v178, 0
      %v427 = vsel %vm207, %v179, 0
      %v430 = vsel %vm207, %v180, 0
      %v433 = vsel %vm207, %v181, 0
      %v436 = vsel %vm207, %v182, 0
      %v439 = vsel %vm207, %v183, 0
      %v442 = vsel %vm207, %v184, 0
      %v445 = vsel %vm207, %v185, 0
      %v448 = vsel %vm207, %v186, 0
      %v451 = vsel %vm207, %v187, 0
      %v454 = vsel %vm256, %v188, 0
      %456 = vmatprep.subr.mxu0 0.0
      %457 = vmatpush1.msra.mxu0 %v454
      %458 = vmatprep.subr.mxu0 0.0
      %459 = vmatpush1.msra.mxu0 0.0
      %460 = vmatprep.subr.mxu0 0.0
      %461 = vmatpush1.msra.mxu0 0.0
      %462 = vmatprep.subr.mxu0 0.0
      %463 = vmatpush1.msra.mxu0 0.0
      %464 = vmatprep.subr.mxu0 0.0
      %465 = vmatpush1.msra.mxu0 0.0
      %466 = vmatprep.subr.mxu0 0.0
      %467 = vmatpush1.msra.mxu0 0.0
      %468 = vmatprep.subr.mxu0 0.0
      %469 = vmatpush1.msra.mxu0 0.0
      %470 = vmatprep.subr.mxu0 0.0
      %471 = vmatpush1.msra.mxu0 0.0
      %472 = vmatprep.subr.mxu0 0.0
      %473 = vmatpush1.msra.mxu0 0.0
      %474 = vmatprep.subr.mxu0 0.0
      %475 = vmatpush1.msra.mxu0 0.0
      %476 = vmatprep.subr.mxu0 0.0
      %477 = vmatpush1.msra.mxu0 0.0
      %478 = vmatprep.subr.mxu0 0.0
      %479 = vmatpush1.msra.mxu0 0.0
      %480 = vmatprep.subr.mxu0 0.0
      %481 = vmatpush1.msra.mxu0 0.0
      %482 = vmatprep.subr.mxu0 0.0
      %483 = vmatpush1.msra.mxu0 0.0
      %484 = vmatprep.subr.mxu0 0.0
      %485 = vmatpush1.msra.mxu0 0.0
      %486 = vmatprep.subr.mxu0 0.0
      %487 = vmatpush1.msra.mxu0 0.0
      %488 = vmatprep.subr.mxu0 0.0
      %489 = vmatpush1.msra.mxu0 0.0
      %490 = vmatprep.subr.mxu0 0.0
      %491 = vmatpush1.msra.mxu0 0.0
      %492 = vmatprep.subr.mxu0 0.0
      %493 = vmatpush1.msra.mxu0 0.0
      %494 = vmatprep.subr.mxu0 0.0
      %495 = vmatpush1.msra.mxu0 0.0
      %496 = vmatprep.subr.mxu0 0.0
      %497 = vmatpush1.msra.mxu0 0.0
      %498 = vmatprep.subr.mxu0 0.0
      %499 = vmatpush1.msra.mxu0 0.0
      %500 = vmatprep.subr.mxu0 0.0
      %501 = vmatpush1.msra.mxu0 0.0
      %502 = vmatprep.subr.mxu0 0.0
      %503 = vmatpush1.msra.mxu0 0.0
      %504 = vmatprep.subr.mxu0 0.0
      %505 = vmatpush1.msra.mxu0 0.0
      %506 = vmatprep.subr.mxu0 0.0
      %507 = vmatpush1.msra.mxu0 0.0
      %508 = vmatprep.subr.mxu0 0.0
      %509 = vmatpush1.msra.mxu0 0.0
      %510 = vmatprep.subr.mxu0 0.0
      %511 = vmatpush1.msra.mxu0 0.0
      %512 = vmatprep.subr.mxu0 0.0
      %513 = vmatpush1.msra.mxu0 0.0
      %514 = vmatprep.subr.mxu0 0.0
      %515 = vmatpush1.msra.mxu0 0.0
      %516 = vmatprep.subr.mxu0 0.0
      %517 = vmatpush1.msra.mxu0 0.0
      %518 = vmatprep.subr.mxu0 0.0
      %519 = vmatpush1.msra.mxu0 0.0
      %520 = vmatprep.mubr.f32.mxu0 0.0
      %521 = vmatmul.mubr.f32.gmra.mrb[0].mxu0 %v406
      %v522 = vpop.f32.mrb[0].mxu0
      %v523 = vadd.f32 %v327, %v522
      %v524 = vpop.f32.mrb[0].mxu0
      %525 = vmatprep.mubr.f32.mxu0 0.0
      %526 = vmatmul.mubr.f32.gmra.mrb[0].mxu0 %v409
      %v527 = vpop.f32.mrb[0].mxu0
      %v528 = vadd.f32 %v332, %v527
      %v529 = vpop.f32.mrb[0].mxu0
      %530 = vmatprep.mubr.f32.mxu0 0.0
      %531 = vmatmul.mubr.f32.gmra.mrb[0].mxu0 %v412
      %v532 = vpop.f32.mrb[0].mxu0
      %v533 = vadd.f32 %v337, %v532
      %v534 = vpop.f32.mrb[0].mxu0
      %535 = vmatprep.mubr.f32.mxu0 0.0
      %536 = vmatmul.mubr.f32.gmra.mrb[0].mxu0 %v415
      %v537 = vpop.f32.mrb[0].mxu0
      %v538 = vadd.f32 %v342, %v537
      %v539 = vpop.f32.mrb[0].mxu0
      %540 = vmatprep.mubr.f32.mxu0 0.0
      %541 = vmatmul.mubr.f32.gmra.mrb[0].mxu0 %v418
      %v542 = vpop.f32.mrb[0].mxu0
      %v543 = vadd.f32 %v347, %v542
      %v544 = vpop.f32.mrb[0].mxu0
      %545 = vmatprep.mubr.f32.mxu0 0.0
      %546 = vmatmul.mubr.f32.gmra.mrb[0].mxu0 %v421
      %v547 = vpop.f32.mrb[0].mxu0
      %v548 = vadd.f32 %v352, %v547
      %v549 = vpop.f32.mrb[0].mxu0
      %550 = vmatprep.mubr.f32.mxu0 0.0
      %551 = vmatmul.mubr.f32.gmra.mrb[0].mxu0 %v424
      %v552 = vpop.f32.mrb[0].mxu0
      %v553 = vadd.f32 %v357, %v552
      %v554 = vpop.f32.mrb[0].mxu0
      %555 = vmatprep.mubr.f32.mxu0 0.0
      %556 = vmatmul.mubr.f32.gmra.mrb[0].mxu0 %v427
      %v557 = vpop.f32.mrb[0].mxu0
      %v558 = vadd.f32 %v362, %v557
      %v559 = vpop.f32.mrb[0].mxu0
      %560 = vmatprep.mubr.f32.mxu0 0.0
      %561 = vmatmul.mubr.f32.gmra.mrb[0].mxu0 %v430
      %v562 = vpop.f32.mrb[0].mxu0
      %v563 = vadd.f32 %v367, %v562
      %v564 = vpop.f32.mrb[0].mxu0
      %565 = vmatprep.mubr.f32.mxu0 0.0
      %566 = vmatmul.mubr.f32.gmra.mrb[0].mxu0 %v433
      %v567 = vpop.f32.mrb[0].mxu0
      %v568 = vadd.f32 %v372, %v567
      %v569 = vpop.f32.mrb[0].mxu0
      %570 = vmatprep.mubr.f32.mxu0 0.0
      %571 = vmatmul.mubr.f32.gmra.mrb[0].mxu0 %v436
      %v572 = vpop.f32.mrb[0].mxu0
      %v573 = vadd.f32 %v377, %v572
      %v574 = vpop.f32.mrb[0].mxu0
      %575 = vmatprep.mubr.f32.mxu0 0.0
      %576 = vmatmul.mubr.f32.gmra.mrb[0].mxu0 %v439
      %v577 = vpop.f32.mrb[0].mxu0
      %v578 = vadd.f32 %v382, %v577
      %v579 = vpop.f32.mrb[0].mxu0
      %580 = vmatprep.mubr.f32.mxu0 0.0
      %581 = vmatmul.mubr.f32.gmra.mrb[0].mxu0 %v442
      %v582 = vpop.f32.mrb[0].mxu0
      %v583 = vadd.f32 %v387, %v582
      %v584 = vpop.f32.mrb[0].mxu0
      %585 = vmatprep.mubr.f32.mxu0 0.0
      %586 = vmatmul.mubr.f32.gmra.mrb[0].mxu0 %v445
      %v587 = vpop.f32.mrb[0].mxu0
      %v588 = vadd.f32 %v392, %v587
      %v589 = vpop.f32.mrb[0].mxu0
      %590 = vmatprep.mubr.f32.mxu0 0.0
      %591 = vmatmul.mubr.f32.gmra.mrb[0].mxu0 %v448
      %v592 = vpop.f32.mrb[0].mxu0
      %v593 = vadd.f32 %v397, %v592
      %v594 = vpop.f32.mrb[0].mxu0
      %595 = vmatprep.mubr.f32.mxu0 0.0
      %596 = vmatmul.mubr.f32.gmra.mrb[0].mxu0 %v451
      %v597 = vpop.f32.mrb[0].mxu0
      %v598 = vadd.f32 %v402, %v597
      %v599 = vpop.f32.mrb[0].mxu0
      %600 = vdwg.mxu0
      %v601 = vld [vmem:[%s171 + $0x4] sm:$0xff]
      %v602 = vld [vmem:[%s171 + $0xc] sm:$0xff]
      %v603 = vld [vmem:[%s171 + $0x1c] sm:$0xff]
      %v604 = vld [vmem:[%s171 + $0x24] sm:$0xff]
      %v605 = vld [vmem:[%s171 + $0x34] sm:$0xff]
      %v606 = vld [vmem:[%s171 + $0x3c] sm:$0xff]
      %v607 = vld [vmem:[%s171 + $0x4c] sm:$0xff]
      %v608 = vld [vmem:[%s171 + $0x54] sm:$0xff]
      %v609 = vld [vmem:[%s171 + $0x64] sm:$0xff]
      %v610 = vld [vmem:[%s171 + $0x6c] sm:$0xff]
      %v611 = vld [vmem:[%s171 + $0x7c] sm:$0xff]
      %v612 = vld [vmem:[%s171 + $0x84] sm:$0xff]
      %v613 = vld [vmem:[%s171 + $0x94] sm:$0xff]
      %v614 = vld [vmem:[%s171 + $0x9c] sm:$0xff]
      %v615 = vld [vmem:[%s171 + $0xac] sm:$0xff]
      %v616 = vld [vmem:[%s171 + $0xb4] sm:$0xff]
      %s617 = scalar_lea.vmem %s1, 8
      %v618 = vld [vmem:[%s617] sm:$0xf]
      %v620 = vsel %vm207, %v601, 0
      %v623 = vsel %vm207, %v602, 0
      %v626 = vsel %vm207, %v603, 0
      %v629 = vsel %vm207, %v604, 0
      %v632 = vsel %vm207, %v605, 0
      %v635 = vsel %vm207, %v606, 0
      %v638 = vsel %vm207, %v607, 0
      %v641 = vsel %vm207, %v608, 0
      %v644 = vsel %vm207, %v609, 0
      %v647 = vsel %vm207, %v610, 0
      %v650 = vsel %vm207, %v611, 0
      %v653 = vsel %vm207, %v612, 0
      %v656 = vsel %vm207, %v613, 0
      %v659 = vsel %vm207, %v614, 0
      %v662 = vsel %vm207, %v615, 0
      %v665 = vsel %vm207, %v616, 0
      %v668 = vsel %vm256, %v618, 0
      %670 = vmatprep.subr.mxu0 0.0
      %671 = vmatpush1.msra.mxu0 %v668
      %672 = vmatprep.subr.mxu0 0.0
      %673 = vmatpush1.msra.mxu0 0.0
      %674 = vmatprep.subr.mxu0 0.0
      %675 = vmatpush1.msra.mxu0 0.0
      %676 = vmatprep.subr.mxu0 0.0
      %677 = vmatpush1.msra.mxu0 0.0
      %678 = vmatprep.subr.mxu0 0.0
      %679 = vmatpush1.msra.mxu0 0.0
      %680 = vmatprep.subr.mxu0 0.0
      %681 = vmatpush1.msra.mxu0 0.0
      %682 = vmatprep.subr.mxu0 0.0
      %683 = vmatpush1.msra.mxu0 0.0
      %684 = vmatprep.subr.mxu0 0.0
      %685 = vmatpush1.msra.mxu0 0.0
      %686 = vmatprep.subr.mxu0 0.0
      %687 = vmatpush1.msra.mxu0 0.0
      %688 = vmatprep.subr.mxu0 0.0
      %689 = vmatpush1.msra.mxu0 0.0
      %690 = vmatprep.subr.mxu0 0.0
      %691 = vmatpush1.msra.mxu0 0.0
      %692 = vmatprep.subr.mxu0 0.0
      %693 = vmatpush1.msra.mxu0 0.0
      %694 = vmatprep.subr.mxu0 0.0
      %695 = vmatpush1.msra.mxu0 0.0
      %696 = vmatprep.subr.mxu0 0.0
      %697 = vmatpush1.msra.mxu0 0.0
      %698 = vmatprep.subr.mxu0 0.0
      %699 = vmatpush1.msra.mxu0 0.0
      %700 = vmatprep.subr.mxu0 0.0
      %701 = vmatpush1.msra.mxu0 0.0
      %702 = vmatprep.subr.mxu0 0.0
      %703 = vmatpush1.msra.mxu0 0.0
      %704 = vmatprep.subr.mxu0 0.0
      %705 = vmatpush1.msra.mxu0 0.0
      %706 = vmatprep.subr.mxu0 0.0
      %707 = vmatpush1.msra.mxu0 0.0
      %708 = vmatprep.subr.mxu0 0.0
      %709 = vmatpush1.msra.mxu0 0.0
      %710 = vmatprep.subr.mxu0 0.0
      %711 = vmatpush1.msra.mxu0 0.0
      %712 = vmatprep.subr.mxu0 0.0
      %713 = vmatpush1.msra.mxu0 0.0
      %714 = vmatprep.subr.mxu0 0.0
      %715 = vmatpush1.msra.mxu0 0.0
      %716 = vmatprep.subr.mxu0 0.0
      %717 = vmatpush1.msra.mxu0 0.0
      %718 = vmatprep.subr.mxu0 0.0
      %719 = vmatpush1.msra.mxu0 0.0
      %720 = vmatprep.subr.mxu0 0.0
      %721 = vmatpush1.msra.mxu0 0.0
      %722 = vmatprep.subr.mxu0 0.0
      %723 = vmatpush1.msra.mxu0 0.0
      %724 = vmatprep.subr.mxu0 0.0
      %725 = vmatpush1.msra.mxu0 0.0
      %726 = vmatprep.subr.mxu0 0.0
      %727 = vmatpush1.msra.mxu0 0.0
      %728 = vmatprep.subr.mxu0 0.0
      %729 = vmatpush1.msra.mxu0 0.0
      %730 = vmatprep.subr.mxu0 0.0
      %731 = vmatpush1.msra.mxu0 0.0
      %732 = vmatprep.subr.mxu0 0.0
      %733 = vmatpush1.msra.mxu0 0.0
      %734 = vmatprep.mubr.f32.mxu0 0.0
      %735 = vmatmul.mubr.f32.gmra.mrb[0].mxu0 %v620
      %v736 = vpop.f32.mrb[0].mxu0
      %v737 = vadd.f32 0.0, %v736
      %v738 = vpop.f32.mrb[0].mxu0
      %739 = vmatprep.mubr.f32.mxu0 0.0
      %740 = vmatmul.mubr.f32.gmra.mrb[0].mxu0 %v623
      %v741 = vpop.f32.mrb[0].mxu0
      %v742 = vadd.f32 0.0, %v741
      %v743 = vpop.f32.mrb[0].mxu0
      %744 = vmatprep.mubr.f32.mxu0 0.0
      %745 = vmatmul.mubr.f32.gmra.mrb[0].mxu0 %v626
      %v746 = vpop.f32.mrb[0].mxu0
      %v747 = vadd.f32 0.0, %v746
      %v748 = vpop.f32.mrb[0].mxu0
      %749 = vmatprep.mubr.f32.mxu0 0.0
      %750 = vmatmul.mubr.f32.gmra.mrb[0].mxu0 %v629
      %v751 = vpop.f32.mrb[0].mxu0
      %v752 = vadd.f32 0.0, %v751
      %v753 = vpop.f32.mrb[0].mxu0
      %754 = vmatprep.mubr.f32.mxu0 0.0
      %755 = vmatmul.mubr.f32.gmra.mrb[0].mxu0 %v632
      %v756 = vpop.f32.mrb[0].mxu0
      %v757 = vadd.f32 0.0, %v756
      %v758 = vpop.f32.mrb[0].mxu0
      %759 = vmatprep.mubr.f32.mxu0 0.0
      %760 = vmatmul.mubr.f32.gmra.mrb[0].mxu0 %v635
      %v761 = vpop.f32.mrb[0].mxu0
      %v762 = vadd.f32 0.0, %v761
      %v763 = vpop.f32.mrb[0].mxu0
      %764 = vmatprep.mubr.f32.mxu0 0.0
      %765 = vmatmul.mubr.f32.gmra.mrb[0].mxu0 %v638
      %v766 = vpop.f32.mrb[0].mxu0
      %v767 = vadd.f32 0.0, %v766
      %v768 = vpop.f32.mrb[0].mxu0
      %769 = vmatprep.mubr.f32.mxu0 0.0
      %770 = vmatmul.mubr.f32.gmra.mrb[0].mxu0 %v641
      %v771 = vpop.f32.mrb[0].mxu0
      %v772 = vadd.f32 0.0, %v771
      %v773 = vpop.f32.mrb[0].mxu0
      %774 = vmatprep.mubr.f32.mxu0 0.0
      %775 = vmatmul.mubr.f32.gmra.mrb[0].mxu0 %v644
      %v776 = vpop.f32.mrb[0].mxu0
      %v777 = vadd.f32 0.0, %v776
      %v778 = vpop.f32.mrb[0].mxu0
      %779 = vmatprep.mubr.f32.mxu0 0.0
      %780 = vmatmul.mubr.f32.gmra.mrb[0].mxu0 %v647
      %v781 = vpop.f32.mrb[0].mxu0
      %v782 = vadd.f32 0.0, %v781
      %v783 = vpop.f32.mrb[0].mxu0
      %784 = vmatprep.mubr.f32.mxu0 0.0
      %785 = vmatmul.mubr.f32.gmra.mrb[0].mxu0 %v650
      %v786 = vpop.f32.mrb[0].mxu0
      %v787 = vadd.f32 0.0, %v786
      %v788 = vpop.f32.mrb[0].mxu0
      %789 = vmatprep.mubr.f32.mxu0 0.0
      %790 = vmatmul.mubr.f32.gmra.mrb[0].mxu0 %v653
      %v791 = vpop.f32.mrb[0].mxu0
      %v792 = vadd.f32 0.0, %v791
      %v793 = vpop.f32.mrb[0].mxu0
      %794 = vmatprep.mubr.f32.mxu0 0.0
      %795 = vmatmul.mubr.f32.gmra.mrb[0].mxu0 %v656
      %v796 = vpop.f32.mrb[0].mxu0
      %v797 = vadd.f32 0.0, %v796
      %v798 = vpop.f32.mrb[0].mxu0
      %799 = vmatprep.mubr.f32.mxu0 0.0
      %800 = vmatmul.mubr.f32.gmra.mrb[0].mxu0 %v659
      %v801 = vpop.f32.mrb[0].mxu0
      %v802 = vadd.f32 0.0, %v801
      %v803 = vpop.f32.mrb[0].mxu0
      %804 = vmatprep.mubr.f32.mxu0 0.0
      %805 = vmatmul.mubr.f32.gmra.mrb[0].mxu0 %v662
      %v806 = vpop.f32.mrb[0].mxu0
      %v807 = vadd.f32 0.0, %v806
      %v808 = vpop.f32.mrb[0].mxu0
      %809 = vmatprep.mubr.f32.mxu0 0.0
      %810 = vmatmul.mubr.f32.gmra.mrb[0].mxu0 %v665
      %v811 = vpop.f32.mrb[0].mxu0
      %v812 = vadd.f32 0.0, %v811
      %v813 = vpop.f32.mrb[0].mxu0
      %814 = vdwg.mxu0
      %v815 = vadd.f32 %v523, %v737
      %v816 = vadd.f32 %v528, %v742
      %v817 = vadd.f32 %v533, %v747
      %v818 = vadd.f32 %v538, %v752
      %v819 = vadd.f32 %v543, %v757
      %v820 = vadd.f32 %v548, %v762
      %v821 = vadd.f32 %v553, %v767
      %v822 = vadd.f32 %v558, %v772
      %v823 = vadd.f32 %v563, %v777
      %v824 = vadd.f32 %v568, %v782
      %v825 = vadd.f32 %v573, %v787
      %v826 = vadd.f32 %v578, %v792
      %v827 = vadd.f32 %v583, %v797
      %v828 = vadd.f32 %v588, %v802
      %v829 = vadd.f32 %v593, %v807
      %v830 = vadd.f32 %v598, %v812
      %s831 = sadd.s32 %s169, 2
      %s832 = smul.u32 %s831, 24
      %s833 = scalar_lea.vmem %s157, %s832
      %v834 = vld [vmem:[%s833] sm:$0xff]
      %v835 = vld [vmem:[%s833 + $0x8] sm:$0xff]
      %v836 = vld [vmem:[%s833 + $0x18] sm:$0xff]
      %v837 = vld [vmem:[%s833 + $0x20] sm:$0xff]
      %v838 = vld [vmem:[%s833 + $0x30] sm:$0xff]
      %v839 = vld [vmem:[%s833 + $0x38] sm:$0xff]
      %v840 = vld [vmem:[%s833 + $0x48] sm:$0xff]
      %v841 = vld [vmem:[%s833 + $0x50] sm:$0xff]
      %v842 = vld [vmem:[%s833 + $0x60] sm:$0xff]
      %v843 = vld [vmem:[%s833 + $0x68] sm:$0xff]
      %v844 = vld [vmem:[%s833 + $0x78] sm:$0xff]
      %v845 = vld [vmem:[%s833 + $0x80] sm:$0xff]
      %v846 = vld [vmem:[%s833 + $0x90] sm:$0xff]
      %v847 = vld [vmem:[%s833 + $0x98] sm:$0xff]
      %v848 = vld [vmem:[%s833 + $0xa8] sm:$0xff]
      %v849 = vld [vmem:[%s833 + $0xb0] sm:$0xff]
      %s850 = scalar_lea.vmem %s1, 12
      %v851 = vld [vmem:[%s850] sm:$0xf]
      %v853 = vsel %vm207, %v834, 0
      %v856 = vsel %vm207, %v835, 0
      %v859 = vsel %vm207, %v836, 0
      %v862 = vsel %vm207, %v837, 0
      %v865 = vsel %vm207, %v838, 0
      %v868 = vsel %vm207, %v839, 0
      %v871 = vsel %vm207, %v840, 0
      %v874 = vsel %vm207, %v841, 0
      %v877 = vsel %vm207, %v842, 0
      %v880 = vsel %vm207, %v843, 0
      %v883 = vsel %vm207, %v844, 0
      %v886 = vsel %vm207, %v845, 0
      %v889 = vsel %vm207, %v846, 0
      %v892 = vsel %vm207, %v847, 0
      %v895 = vsel %vm207, %v848, 0
      %v898 = vsel %vm207, %v849, 0
      %v901 = vsel %vm256, %v851, 0
      %903 = vmatprep.subr.mxu0 0.0
      %904 = vmatpush1.msra.mxu0 %v901
      %905 = vmatprep.subr.mxu0 0.0
      %906 = vmatpush1.msra.mxu0 0.0
      %907 = vmatprep.subr.mxu0 0.0
      %908 = vmatpush1.msra.mxu0 0.0
      %909 = vmatprep.subr.mxu0 0.0
      %910 = vmatpush1.msra.mxu0 0.0
      %911 = vmatprep.subr.mxu0 0.0
      %912 = vmatpush1.msra.mxu0 0.0
      %913 = vmatprep.subr.mxu0 0.0
      %914 = vmatpush1.msra.mxu0 0.0
      %915 = vmatprep.subr.mxu0 0.0
      %916 = vmatpush1.msra.mxu0 0.0
      %917 = vmatprep.subr.mxu0 0.0
      %918 = vmatpush1.msra.mxu0 0.0
      %919 = vmatprep.subr.mxu0 0.0
      %920 = vmatpush1.msra.mxu0 0.0
      %921 = vmatprep.subr.mxu0 0.0
      %922 = vmatpush1.msra.mxu0 0.0
      %923 = vmatprep.subr.mxu0 0.0
      %924 = vmatpush1.msra.mxu0 0.0
      %925 = vmatprep.subr.mxu0 0.0
      %926 = vmatpush1.msra.mxu0 0.0
      %927 = vmatprep.subr.mxu0 0.0
      %928 = vmatpush1.msra.mxu0 0.0
      %929 = vmatprep.subr.mxu0 0.0
      %930 = vmatpush1.msra.mxu0 0.0
      %931 = vmatprep.subr.mxu0 0.0
      %932 = vmatpush1.msra.mxu0 0.0
      %933 = vmatprep.subr.mxu0 0.0
      %934 = vmatpush1.msra.mxu0 0.0
      %935 = vmatprep.subr.mxu0 0.0
      %936 = vmatpush1.msra.mxu0 0.0
      %937 = vmatprep.subr.mxu0 0.0
      %938 = vmatpush1.msra.mxu0 0.0
      %939 = vmatprep.subr.mxu0 0.0
      %940 = vmatpush1.msra.mxu0 0.0
      %941 = vmatprep.subr.mxu0 0.0
      %942 = vmatpush1.msra.mxu0 0.0
      %943 = vmatprep.subr.mxu0 0.0
      %944 = vmatpush1.msra.mxu0 0.0
      %945 = vmatprep.subr.mxu0 0.0
      %946 = vmatpush1.msra.mxu0 0.0
      %947 = vmatprep.subr.mxu0 0.0
      %948 = vmatpush1.msra.mxu0 0.0
      %949 = vmatprep.subr.mxu0 0.0
      %950 = vmatpush1.msra.mxu0 0.0
      %951 = vmatprep.subr.mxu0 0.0
      %952 = vmatpush1.msra.mxu0 0.0
      %953 = vmatprep.subr.mxu0 0.0
      %954 = vmatpush1.msra.mxu0 0.0
      %955 = vmatprep.subr.mxu0 0.0
      %956 = vmatpush1.msra.mxu0 0.0
      %957 = vmatprep.subr.mxu0 0.0
      %958 = vmatpush1.msra.mxu0 0.0
      %959 = vmatprep.subr.mxu0 0.0
      %960 = vmatpush1.msra.mxu0 0.0
      %961 = vmatprep.subr.mxu0 0.0
      %962 = vmatpush1.msra.mxu0 0.0
      %963 = vmatprep.subr.mxu0 0.0
      %964 = vmatpush1.msra.mxu0 0.0
      %965 = vmatprep.subr.mxu0 0.0
      %966 = vmatpush1.msra.mxu0 0.0
      %967 = vmatprep.mubr.f32.mxu0 0.0
      %968 = vmatmul.mubr.f32.gmra.mrb[0].mxu0 %v853
      %v969 = vpop.f32.mrb[0].mxu0
      %v970 = vadd.f32 0.0, %v969
      %v971 = vpop.f32.mrb[0].mxu0
      %972 = vmatprep.mubr.f32.mxu0 0.0
      %973 = vmatmul.mubr.f32.gmra.mrb[0].mxu0 %v856
      %v974 = vpop.f32.mrb[0].mxu0
      %v975 = vadd.f32 0.0, %v974
      %v976 = vpop.f32.mrb[0].mxu0
      %977 = vmatprep.mubr.f32.mxu0 0.0
      %978 = vmatmul.mubr.f32.gmra.mrb[0].mxu0 %v859
      %v979 = vpop.f32.mrb[0].mxu0
      %v980 = vadd.f32 0.0, %v979
      %v981 = vpop.f32.mrb[0].mxu0
      %982 = vmatprep.mubr.f32.mxu0 0.0
      %983 = vmatmul.mubr.f32.gmra.mrb[0].mxu0 %v862
      %v984 = vpop.f32.mrb[0].mxu0
      %v985 = vadd.f32 0.0, %v984
      %v986 = vpop.f32.mrb[0].mxu0
      %987 = vmatprep.mubr.f32.mxu0 0.0
      %988 = vmatmul.mubr.f32.gmra.mrb[0].mxu0 %v865
      %v989 = vpop.f32.mrb[0].mxu0
      %v990 = vadd.f32 0.0, %v989
      %v991 = vpop.f32.mrb[0].mxu0
      %992 = vmatprep.mubr.f32.mxu0 0.0
      %993 = vmatmul.mubr.f32.gmra.mrb[0].mxu0 %v868
      %v994 = vpop.f32.mrb[0].mxu0
      %v995 = vadd.f32 0.0, %v994
      %v996 = vpop.f32.mrb[0].mxu0
      %997 = vmatprep.mubr.f32.mxu0 0.0
      %998 = vmatmul.mubr.f32.gmra.mrb[0].mxu0 %v871
      %v999 = vpop.f32.mrb[0].mxu0
      %v1000 = vadd.f32 0.0, %v999
      %v1001 = vpop.f32.mrb[0].mxu0
      %1002 = vmatprep.mubr.f32.mxu0 0.0
      %1003 = vmatmul.mubr.f32.gmra.mrb[0].mxu0 %v874
      %v1004 = vpop.f32.mrb[0].mxu0
      %v1005 = vadd.f32 0.0, %v1004
      %v1006 = vpop.f32.mrb[0].mxu0
      %1007 = vmatprep.mubr.f32.mxu0 0.0
      %1008 = vmatmul.mubr.f32.gmra.mrb[0].mxu0 %v877
      %v1009 = vpop.f32.mrb[0].mxu0
      %v1010 = vadd.f32 0.0, %v1009
      %v1011 = vpop.f32.mrb[0].mxu0
      %1012 = vmatprep.mubr.f32.mxu0 0.0
      %1013 = vmatmul.mubr.f32.gmra.mrb[0].mxu0 %v880
      %v1014 = vpop.f32.mrb[0].mxu0
      %v1015 = vadd.f32 0.0, %v1014
      %v1016 = vpop.f32.mrb[0].mxu0
      %1017 = vmatprep.mubr.f32.mxu0 0.0
      %1018 = vmatmul.mubr.f32.gmra.mrb[0].mxu0 %v883
      %v1019 = vpop.f32.mrb[0].mxu0
      %v1020 = vadd.f32 0.0, %v1019
      %v1021 = vpop.f32.mrb[0].mxu0
      %1022 = vmatprep.mubr.f32.mxu0 0.0
      %1023 = vmatmul.mubr.f32.gmra.mrb[0].mxu0 %v886
      %v1024 = vpop.f32.mrb[0].mxu0
      %v1025 = vadd.f32 0.0, %v1024
      %v1026 = vpop.f32.mrb[0].mxu0
      %1027 = vmatprep.mubr.f32.mxu0 0.0
      %1028 = vmatmul.mubr.f32.gmra.mrb[0].mxu0 %v889
      %v1029 = vpop.f32.mrb[0].mxu0
      %v1030 = vadd.f32 0.0, %v1029
      %v1031 = vpop.f32.mrb[0].mxu0
      %1032 = vmatprep.mubr.f32.mxu0 0.0
      %1033 = vmatmul.mubr.f32.gmra.mrb[0].mxu0 %v892
      %v1034 = vpop.f32.mrb[0].mxu0
      %v1035 = vadd.f32 0.0, %v1034
      %v1036 = vpop.f32.mrb[0].mxu0
      %1037 = vmatprep.mubr.f32.mxu0 0.0
      %1038 = vmatmul.mubr.f32.gmra.mrb[0].mxu0 %v895
      %v1039 = vpop.f32.mrb[0].mxu0
      %v1040 = vadd.f32 0.0, %v1039
      %v1041 = vpop.f32.mrb[0].mxu0
      %1042 = vmatprep.mubr.f32.mxu0 0.0
      %1043 = vmatmul.mubr.f32.gmra.mrb[0].mxu0 %v898
      %v1044 = vpop.f32.mrb[0].mxu0
      %v1045 = vadd.f32 0.0, %v1044
      %v1046 = vpop.f32.mrb[0].mxu0
      %1047 = vdwg.mxu0
      %v1048 = vadd.f32 %v815, %v970
      %v1049 = vadd.f32 %v816, %v975
      %v1050 = vadd.f32 %v817, %v980
      %v1051 = vadd.f32 %v818, %v985
      %v1052 = vadd.f32 %v819, %v990
      %v1053 = vadd.f32 %v820, %v995
      %v1054 = vadd.f32 %v821, %v1000
      %v1055 = vadd.f32 %v822, %v1005
      %v1056 = vadd.f32 %v823, %v1010
      %v1057 = vadd.f32 %v824, %v1015
      %v1058 = vadd.f32 %v825, %v1020
      %v1059 = vadd.f32 %v826, %v1025
      %v1060 = vadd.f32 %v827, %v1030
      %v1061 = vadd.f32 %v828, %v1035
      %v1062 = vadd.f32 %v829, %v1040
      %v1063 = vadd.f32 %v830, %v1045
      %v1064 = vld [vmem:[%s833 + $0x2] sm:$0xff]
      %v1065 = vld [vmem:[%s833 + $0xa] sm:$0xff]
      %v1066 = vld [vmem:[%s833 + $0x1a] sm:$0xff]
      %v1067 = vld [vmem:[%s833 + $0x22] sm:$0xff]
      %v1068 = vld [vmem:[%s833 + $0x32] sm:$0xff]
      %v1069 = vld [vmem:[%s833 + $0x3a] sm:$0xff]
      %v1070 = vld [vmem:[%s833 + $0x4a] sm:$0xff]
      %v1071 = vld [vmem:[%s833 + $0x52] sm:$0xff]
      %v1072 = vld [vmem:[%s833 + $0x62] sm:$0xff]
      %v1073 = vld [vmem:[%s833 + $0x6a] sm:$0xff]
      %v1074 = vld [vmem:[%s833 + $0x7a] sm:$0xff]
      %v1075 = vld [vmem:[%s833 + $0x82] sm:$0xff]
      %v1076 = vld [vmem:[%s833 + $0x92] sm:$0xff]
      %v1077 = vld [vmem:[%s833 + $0x9a] sm:$0xff]
      %v1078 = vld [vmem:[%s833 + $0xaa] sm:$0xff]
      %v1079 = vld [vmem:[%s833 + $0xb2] sm:$0xff]
      %s1080 = scalar_lea.vmem %s1, 16
      %v1081 = vld [vmem:[%s1080] sm:$0xf]
      %v1083 = vsel %vm207, %v1064, 0
      %v1086 = vsel %vm207, %v1065, 0
      %v1089 = vsel %vm207, %v1066, 0
      %v1092 = vsel %vm207, %v1067, 0
      %v1095 = vsel %vm207, %v1068, 0
      %v1098 = vsel %vm207, %v1069, 0
      %v1101 = vsel %vm207, %v1070, 0
      %v1104 = vsel %vm207, %v1071, 0
      %v1107 = vsel %vm207, %v1072, 0
      %v1110 = vsel %vm207, %v1073, 0
      %v1113 = vsel %vm207, %v1074, 0
      %v1116 = vsel %vm207, %v1075, 0
      %v1119 = vsel %vm207, %v1076, 0
      %v1122 = vsel %vm207, %v1077, 0
      %v1125 = vsel %vm207, %v1078, 0
      %v1128 = vsel %vm207, %v1079, 0
      %v1131 = vsel %vm256, %v1081, 0
      %1133 = vmatprep.subr.mxu0 0.0
      %1134 = vmatpush1.msra.mxu0 %v1131
      %1135 = vmatprep.subr.mxu0 0.0
      %1136 = vmatpush1.msra.mxu0 0.0
      %1137 = vmatprep.subr.mxu0 0.0
      %1138 = vmatpush1.msra.mxu0 0.0
      %1139 = vmatprep.subr.mxu0 0.0
      %1140 = vmatpush1.msra.mxu0 0.0
      %1141 = vmatprep.subr.mxu0 0.0
      %1142 = vmatpush1.msra.mxu0 0.0
      %1143 = vmatprep.subr.mxu0 0.0
      %1144 = vmatpush1.msra.mxu0 0.0
      %1145 = vmatprep.subr.mxu0 0.0
      %1146 = vmatpush1.msra.mxu0 0.0
      %1147 = vmatprep.subr.mxu0 0.0
      %1148 = vmatpush1.msra.mxu0 0.0
      %1149 = vmatprep.subr.mxu0 0.0
      %1150 = vmatpush1.msra.mxu0 0.0
      %1151 = vmatprep.subr.mxu0 0.0
      %1152 = vmatpush1.msra.mxu0 0.0
      %1153 = vmatprep.subr.mxu0 0.0
      %1154 = vmatpush1.msra.mxu0 0.0
      %1155 = vmatprep.subr.mxu0 0.0
      %1156 = vmatpush1.msra.mxu0 0.0
      %1157 = vmatprep.subr.mxu0 0.0
      %1158 = vmatpush1.msra.mxu0 0.0
      %1159 = vmatprep.subr.mxu0 0.0
      %1160 = vmatpush1.msra.mxu0 0.0
      %1161 = vmatprep.subr.mxu0 0.0
      %1162 = vmatpush1.msra.mxu0 0.0
      %1163 = vmatprep.subr.mxu0 0.0
      %1164 = vmatpush1.msra.mxu0 0.0
      %1165 = vmatprep.subr.mxu0 0.0
      %1166 = vmatpush1.msra.mxu0 0.0
      %1167 = vmatprep.subr.mxu0 0.0
      %1168 = vmatpush1.msra.mxu0 0.0
      %1169 = vmatprep.subr.mxu0 0.0
      %1170 = vmatpush1.msra.mxu0 0.0
      %1171 = vmatprep.subr.mxu0 0.0
      %1172 = vmatpush1.msra.mxu0 0.0
      %1173 = vmatprep.subr.mxu0 0.0
      %1174 = vmatpush1.msra.mxu0 0.0
      %1175 = vmatprep.subr.mxu0 0.0
      %1176 = vmatpush1.msra.mxu0 0.0
      %1177 = vmatprep.subr.mxu0 0.0
      %1178 = vmatpush1.msra.mxu0 0.0
      %1179 = vmatprep.subr.mxu0 0.0
      %1180 = vmatpush1.msra.mxu0 0.0
      %1181 = vmatprep.subr.mxu0 0.0
      %1182 = vmatpush1.msra.mxu0 0.0
      %1183 = vmatprep.subr.mxu0 0.0
      %1184 = vmatpush1.msra.mxu0 0.0
      %1185 = vmatprep.subr.mxu0 0.0
      %1186 = vmatpush1.msra.mxu0 0.0
      %1187 = vmatprep.subr.mxu0 0.0
      %1188 = vmatpush1.msra.mxu0 0.0
      %1189 = vmatprep.subr.mxu0 0.0
      %1190 = vmatpush1.msra.mxu0 0.0
      %1191 = vmatprep.subr.mxu0 0.0
      %1192 = vmatpush1.msra.mxu0 0.0
      %1193 = vmatprep.subr.mxu0 0.0
      %1194 = vmatpush1.msra.mxu0 0.0
      %1195 = vmatprep.subr.mxu0 0.0
      %1196 = vmatpush1.msra.mxu0 0.0
      %1197 = vmatprep.mubr.f32.mxu0 0.0
      %1198 = vmatmul.mubr.f32.gmra.mrb[0].mxu0 %v1083
      %v1199 = vpop.f32.mrb[0].mxu0
      %v1200 = vadd.f32 0.0, %v1199
      %v1201 = vpop.f32.mrb[0].mxu0
      %1202 = vmatprep.mubr.f32.mxu0 0.0
      %1203 = vmatmul.mubr.f32.gmra.mrb[0].mxu0 %v1086
      %v1204 = vpop.f32.mrb[0].mxu0
      %v1205 = vadd.f32 0.0, %v1204
      %v1206 = vpop.f32.mrb[0].mxu0
      %1207 = vmatprep.mubr.f32.mxu0 0.0
      %1208 = vmatmul.mubr.f32.gmra.mrb[0].mxu0 %v1089
      %v1209 = vpop.f32.mrb[0].mxu0
      %v1210 = vadd.f32 0.0, %v1209
      %v1211 = vpop.f32.mrb[0].mxu0
      %1212 = vmatprep.mubr.f32.mxu0 0.0
      %1213 = vmatmul.mubr.f32.gmra.mrb[0].mxu0 %v1092
      %v1214 = vpop.f32.mrb[0].mxu0
      %v1215 = vadd.f32 0.0, %v1214
      %v1216 = vpop.f32.mrb[0].mxu0
      %1217 = vmatprep.mubr.f32.mxu0 0.0
      %1218 = vmatmul.mubr.f32.gmra.mrb[0].mxu0 %v1095
      %v1219 = vpop.f32.mrb[0].mxu0
      %v1220 = vadd.f32 0.0, %v1219
      %v1221 = vpop.f32.mrb[0].mxu0
      %1222 = vmatprep.mubr.f32.mxu0 0.0
      %1223 = vmatmul.mubr.f32.gmra.mrb[0].mxu0 %v1098
      %v1224 = vpop.f32.mrb[0].mxu0
      %v1225 = vadd.f32 0.0, %v1224
      %v1226 = vpop.f32.mrb[0].mxu0
      %1227 = vmatprep.mubr.f32.mxu0 0.0
      %1228 = vmatmul.mubr.f32.gmra.mrb[0].mxu0 %v1101
      %v1229 = vpop.f32.mrb[0].mxu0
      %v1230 = vadd.f32 0.0, %v1229
      %v1231 = vpop.f32.mrb[0].mxu0
      %1232 = vmatprep.mubr.f32.mxu0 0.0
      %1233 = vmatmul.mubr.f32.gmra.mrb[0].mxu0 %v1104
      %v1234 = vpop.f32.mrb[0].mxu0
      %v1235 = vadd.f32 0.0, %v1234
      %v1236 = vpop.f32.mrb[0].mxu0
      %1237 = vmatprep.mubr.f32.mxu0 0.0
      %1238 = vmatmul.mubr.f32.gmra.mrb[0].mxu0 %v1107
      %v1239 = vpop.f32.mrb[0].mxu0
      %v1240 = vadd.f32 0.0, %v1239
      %v1241 = vpop.f32.mrb[0].mxu0
      %1242 = vmatprep.mubr.f32.mxu0 0.0
      %1243 = vmatmul.mubr.f32.gmra.mrb[0].mxu0 %v1110
      %v1244 = vpop.f32.mrb[0].mxu0
      %v1245 = vadd.f32 0.0, %v1244
      %v1246 = vpop.f32.mrb[0].mxu0
      %1247 = vmatprep.mubr.f32.mxu0 0.0
      %1248 = vmatmul.mubr.f32.gmra.mrb[0].mxu0 %v1113
      %v1249 = vpop.f32.mrb[0].mxu0
      %v1250 = vadd.f32 0.0, %v1249
      %v1251 = vpop.f32.mrb[0].mxu0
      %1252 = vmatprep.mubr.f32.mxu0 0.0
      %1253 = vmatmul.mubr.f32.gmra.mrb[0].mxu0 %v1116
      %v1254 = vpop.f32.mrb[0].mxu0
      %v1255 = vadd.f32 0.0, %v1254
      %v1256 = vpop.f32.mrb[0].mxu0
      %1257 = vmatprep.mubr.f32.mxu0 0.0
      %1258 = vmatmul.mubr.f32.gmra.mrb[0].mxu0 %v1119
      %v1259 = vpop.f32.mrb[0].mxu0
      %v1260 = vadd.f32 0.0, %v1259
      %v1261 = vpop.f32.mrb[0].mxu0
      %1262 = vmatprep.mubr.f32.mxu0 0.0
      %1263 = vmatmul.mubr.f32.gmra.mrb[0].mxu0 %v1122
      %v1264 = vpop.f32.mrb[0].mxu0
      %v1265 = vadd.f32 0.0, %v1264
      %v1266 = vpop.f32.mrb[0].mxu0
      %1267 = vmatprep.mubr.f32.mxu0 0.0
      %1268 = vmatmul.mubr.f32.gmra.mrb[0].mxu0 %v1125
      %v1269 = vpop.f32.mrb[0].mxu0
      %v1270 = vadd.f32 0.0, %v1269
      %v1271 = vpop.f32.mrb[0].mxu0
      %1272 = vmatprep.mubr.f32.mxu0 0.0
      %1273 = vmatmul.mubr.f32.gmra.mrb[0].mxu0 %v1128
      %v1274 = vpop.f32.mrb[0].mxu0
      %v1275 = vadd.f32 0.0, %v1274
      %v1276 = vpop.f32.mrb[0].mxu0
      %1277 = vdwg.mxu0
      %v1278 = vadd.f32 %v1048, %v1200
      %v1279 = vadd.f32 %v1049, %v1205
      %v1280 = vadd.f32 %v1050, %v1210
      %v1281 = vadd.f32 %v1051, %v1215
      %v1282 = vadd.f32 %v1052, %v1220
      %v1283 = vadd.f32 %v1053, %v1225
      %v1284 = vadd.f32 %v1054, %v1230
      %v1285 = vadd.f32 %v1055, %v1235
      %v1286 = vadd.f32 %v1056, %v1240
      %v1287 = vadd.f32 %v1057, %v1245
      %v1288 = vadd.f32 %v1058, %v1250
      %v1289 = vadd.f32 %v1059, %v1255
      %v1290 = vadd.f32 %v1060, %v1260
      %v1291 = vadd.f32 %v1061, %v1265
      %v1292 = vadd.f32 %v1062, %v1270
      %v1293 = vadd.f32 %v1063, %v1275
      %v1294 = vld [vmem:[%s833 + $0x4] sm:$0xff]
      %v1295 = vld [vmem:[%s833 + $0xc] sm:$0xff]
      %v1296 = vld [vmem:[%s833 + $0x1c] sm:$0xff]
      %v1297 = vld [vmem:[%s833 + $0x24] sm:$0xff]
      %v1298 = vld [vmem:[%s833 + $0x34] sm:$0xff]
      %v1299 = vld [vmem:[%s833 + $0x3c] sm:$0xff]
      %v1300 = vld [vmem:[%s833 + $0x4c] sm:$0xff]
      %v1301 = vld [vmem:[%s833 + $0x54] sm:$0xff]
      %v1302 = vld [vmem:[%s833 + $0x64] sm:$0xff]
      %v1303 = vld [vmem:[%s833 + $0x6c] sm:$0xff]
      %v1304 = vld [vmem:[%s833 + $0x7c] sm:$0xff]
      %v1305 = vld [vmem:[%s833 + $0x84] sm:$0xff]
      %v1306 = vld [vmem:[%s833 + $0x94] sm:$0xff]
      %v1307 = vld [vmem:[%s833 + $0x9c] sm:$0xff]
      %v1308 = vld [vmem:[%s833 + $0xac] sm:$0xff]
      %v1309 = vld [vmem:[%s833 + $0xb4] sm:$0xff]
      %s1310 = scalar_lea.vmem %s1, 20
      %v1311 = vld [vmem:[%s1310] sm:$0xf]
      %v1313 = vsel %vm207, %v1294, 0
      %v1316 = vsel %vm207, %v1295, 0
      %v1319 = vsel %vm207, %v1296, 0
      %v1322 = vsel %vm207, %v1297, 0
      %v1325 = vsel %vm207, %v1298, 0
      %v1328 = vsel %vm207, %v1299, 0
      %v1331 = vsel %vm207, %v1300, 0
      %v1334 = vsel %vm207, %v1301, 0
      %v1337 = vsel %vm207, %v1302, 0
      %v1340 = vsel %vm207, %v1303, 0
      %v1343 = vsel %vm207, %v1304, 0
      %v1346 = vsel %vm207, %v1305, 0
      %v1349 = vsel %vm207, %v1306, 0
      %v1352 = vsel %vm207, %v1307, 0
      %v1355 = vsel %vm207, %v1308, 0
      %v1358 = vsel %vm207, %v1309, 0
      %v1361 = vsel %vm256, %v1311, 0
      %1363 = vmatprep.subr.mxu0 0.0
      %1364 = vmatpush1.msra.mxu0 %v1361
      %1365 = vmatprep.subr.mxu0 0.0
      %1366 = vmatpush1.msra.mxu0 0.0
      %1367 = vmatprep.subr.mxu0 0.0
      %1368 = vmatpush1.msra.mxu0 0.0
      %1369 = vmatprep.subr.mxu0 0.0
      %1370 = vmatpush1.msra.mxu0 0.0
      %1371 = vmatprep.subr.mxu0 0.0
      %1372 = vmatpush1.msra.mxu0 0.0
      %1373 = vmatprep.subr.mxu0 0.0
      %1374 = vmatpush1.msra.mxu0 0.0
      %1375 = vmatprep.subr.mxu0 0.0
      %1376 = vmatpush1.msra.mxu0 0.0
      %1377 = vmatprep.subr.mxu0 0.0
      %1378 = vmatpush1.msra.mxu0 0.0
      %1379 = vmatprep.subr.mxu0 0.0
      %1380 = vmatpush1.msra.mxu0 0.0
      %1381 = vmatprep.subr.mxu0 0.0
      %1382 = vmatpush1.msra.mxu0 0.0
      %1383 = vmatprep.subr.mxu0 0.0
      %1384 = vmatpush1.msra.mxu0 0.0
      %1385 = vmatprep.subr.mxu0 0.0
      %1386 = vmatpush1.msra.mxu0 0.0
      %1387 = vmatprep.subr.mxu0 0.0
      %1388 = vmatpush1.msra.mxu0 0.0
      %1389 = vmatprep.subr.mxu0 0.0
      %1390 = vmatpush1.msra.mxu0 0.0
      %1391 = vmatprep.subr.mxu0 0.0
      %1392 = vmatpush1.msra.mxu0 0.0
      %1393 = vmatprep.subr.mxu0 0.0
      %1394 = vmatpush1.msra.mxu0 0.0
      %1395 = vmatprep.subr.mxu0 0.0
      %1396 = vmatpush1.msra.mxu0 0.0
      %1397 = vmatprep.subr.mxu0 0.0
      %1398 = vmatpush1.msra.mxu0 0.0
      %1399 = vmatprep.subr.mxu0 0.0
      %1400 = vmatpush1.msra.mxu0 0.0
      %1401 = vmatprep.subr.mxu0 0.0
      %1402 = vmatpush1.msra.mxu0 0.0
      %1403 = vmatprep.subr.mxu0 0.0
      %1404 = vmatpush1.msra.mxu0 0.0
      %1405 = vmatprep.subr.mxu0 0.0
      %1406 = vmatpush1.msra.mxu0 0.0
      %1407 = vmatprep.subr.mxu0 0.0
      %1408 = vmatpush1.msra.mxu0 0.0
      %1409 = vmatprep.subr.mxu0 0.0
      %1410 = vmatpush1.msra.mxu0 0.0
      %1411 = vmatprep.subr.mxu0 0.0
      %1412 = vmatpush1.msra.mxu0 0.0
      %1413 = vmatprep.subr.mxu0 0.0
      %1414 = vmatpush1.msra.mxu0 0.0
      %1415 = vmatprep.subr.mxu0 0.0
      %1416 = vmatpush1.msra.mxu0 0.0
      %1417 = vmatprep.subr.mxu0 0.0
      %1418 = vmatpush1.msra.mxu0 0.0
      %1419 = vmatprep.subr.mxu0 0.0
      %1420 = vmatpush1.msra.mxu0 0.0
      %1421 = vmatprep.subr.mxu0 0.0
      %1422 = vmatpush1.msra.mxu0 0.0
      %1423 = vmatprep.subr.mxu0 0.0
      %1424 = vmatpush1.msra.mxu0 0.0
      %1425 = vmatprep.subr.mxu0 0.0
      %1426 = vmatpush1.msra.mxu0 0.0
      %1427 = vmatprep.mubr.f32.mxu0 0.0
      %1428 = vmatmul.mubr.f32.gmra.mrb[0].mxu0 %v1313
      %v1429 = vpop.f32.mrb[0].mxu0
      %v1430 = vadd.f32 0.0, %v1429
      %v1431 = vpop.f32.mrb[0].mxu0
      %1432 = vmatprep.mubr.f32.mxu0 0.0
      %1433 = vmatmul.mubr.f32.gmra.mrb[0].mxu0 %v1316
      %v1434 = vpop.f32.mrb[0].mxu0
      %v1435 = vadd.f32 0.0, %v1434
      %v1436 = vpop.f32.mrb[0].mxu0
      %1437 = vmatprep.mubr.f32.mxu0 0.0
      %1438 = vmatmul.mubr.f32.gmra.mrb[0].mxu0 %v1319
      %v1439 = vpop.f32.mrb[0].mxu0
      %v1440 = vadd.f32 0.0, %v1439
      %v1441 = vpop.f32.mrb[0].mxu0
      %1442 = vmatprep.mubr.f32.mxu0 0.0
      %1443 = vmatmul.mubr.f32.gmra.mrb[0].mxu0 %v1322
      %v1444 = vpop.f32.mrb[0].mxu0
      %v1445 = vadd.f32 0.0, %v1444
      %v1446 = vpop.f32.mrb[0].mxu0
      %1447 = vmatprep.mubr.f32.mxu0 0.0
      %1448 = vmatmul.mubr.f32.gmra.mrb[0].mxu0 %v1325
      %v1449 = vpop.f32.mrb[0].mxu0
      %v1450 = vadd.f32 0.0, %v1449
      %v1451 = vpop.f32.mrb[0].mxu0
      %1452 = vmatprep.mubr.f32.mxu0 0.0
      %1453 = vmatmul.mubr.f32.gmra.mrb[0].mxu0 %v1328
      %v1454 = vpop.f32.mrb[0].mxu0
      %v1455 = vadd.f32 0.0, %v1454
      %v1456 = vpop.f32.mrb[0].mxu0
      %1457 = vmatprep.mubr.f32.mxu0 0.0
      %1458 = vmatmul.mubr.f32.gmra.mrb[0].mxu0 %v1331
      %v1459 = vpop.f32.mrb[0].mxu0
      %v1460 = vadd.f32 0.0, %v1459
      %v1461 = vpop.f32.mrb[0].mxu0
      %1462 = vmatprep.mubr.f32.mxu0 0.0
      %1463 = vmatmul.mubr.f32.gmra.mrb[0].mxu0 %v1334
      %v1464 = vpop.f32.mrb[0].mxu0
      %v1465 = vadd.f32 0.0, %v1464
      %v1466 = vpop.f32.mrb[0].mxu0
      %1467 = vmatprep.mubr.f32.mxu0 0.0
      %1468 = vmatmul.mubr.f32.gmra.mrb[0].mxu0 %v1337
      %v1469 = vpop.f32.mrb[0].mxu0
      %v1470 = vadd.f32 0.0, %v1469
      %v1471 = vpop.f32.mrb[0].mxu0
      %1472 = vmatprep.mubr.f32.mxu0 0.0
      %1473 = vmatmul.mubr.f32.gmra.mrb[0].mxu0 %v1340
      %v1474 = vpop.f32.mrb[0].mxu0
      %v1475 = vadd.f32 0.0, %v1474
      %v1476 = vpop.f32.mrb[0].mxu0
      %1477 = vmatprep.mubr.f32.mxu0 0.0
      %1478 = vmatmul.mubr.f32.gmra.mrb[0].mxu0 %v1343
      %v1479 = vpop.f32.mrb[0].mxu0
      %v1480 = vadd.f32 0.0, %v1479
      %v1481 = vpop.f32.mrb[0].mxu0
      %1482 = vmatprep.mubr.f32.mxu0 0.0
      %1483 = vmatmul.mubr.f32.gmra.mrb[0].mxu0 %v1346
      %v1484 = vpop.f32.mrb[0].mxu0
      %v1485 = vadd.f32 0.0, %v1484
      %v1486 = vpop.f32.mrb[0].mxu0
      %1487 = vmatprep.mubr.f32.mxu0 0.0
      %1488 = vmatmul.mubr.f32.gmra.mrb[0].mxu0 %v1349
      %v1489 = vpop.f32.mrb[0].mxu0
      %v1490 = vadd.f32 0.0, %v1489
      %v1491 = vpop.f32.mrb[0].mxu0
      %1492 = vmatprep.mubr.f32.mxu0 0.0
      %1493 = vmatmul.mubr.f32.gmra.mrb[0].mxu0 %v1352
      %v1494 = vpop.f32.mrb[0].mxu0
      %v1495 = vadd.f32 0.0, %v1494
      %v1496 = vpop.f32.mrb[0].mxu0
      %1497 = vmatprep.mubr.f32.mxu0 0.0
      %1498 = vmatmul.mubr.f32.gmra.mrb[0].mxu0 %v1355
      %v1499 = vpop.f32.mrb[0].mxu0
      %v1500 = vadd.f32 0.0, %v1499
      %v1501 = vpop.f32.mrb[0].mxu0
      %1502 = vmatprep.mubr.f32.mxu0 0.0
      %1503 = vmatmul.mubr.f32.gmra.mrb[0].mxu0 %v1358
      %v1504 = vpop.f32.mrb[0].mxu0
      %v1505 = vadd.f32 0.0, %v1504
      %v1506 = vpop.f32.mrb[0].mxu0
      %1507 = vdwg.mxu0
      %v1508 = vadd.f32 %v1278, %v1430
      %v1509 = vadd.f32 %v1279, %v1435
      %v1510 = vadd.f32 %v1280, %v1440
      %v1511 = vadd.f32 %v1281, %v1445
      %v1512 = vadd.f32 %v1282, %v1450
      %v1513 = vadd.f32 %v1283, %v1455
      %v1514 = vadd.f32 %v1284, %v1460
      %v1515 = vadd.f32 %v1285, %v1465
      %v1516 = vadd.f32 %v1286, %v1470
      %v1517 = vadd.f32 %v1287, %v1475
      %v1518 = vadd.f32 %v1288, %v1480
      %v1519 = vadd.f32 %v1289, %v1485
      %v1520 = vadd.f32 %v1290, %v1490
      %v1521 = vadd.f32 %v1291, %v1495
      %v1522 = vadd.f32 %v1292, %v1500
      %v1523 = vadd.f32 %v1293, %v1505
      %s1524 = sadd.s32 %s169, 4
      %s1525 = smul.u32 %s1524, 24
      %s1526 = scalar_lea.vmem %s157, %s1525
      %v1527 = vld [vmem:[%s1526] sm:$0xff]
      %v1528 = vld [vmem:[%s1526 + $0x8] sm:$0xff]
      %v1529 = vld [vmem:[%s1526 + $0x18] sm:$0xff]
      %v1530 = vld [vmem:[%s1526 + $0x20] sm:$0xff]
      %v1531 = vld [vmem:[%s1526 + $0x30] sm:$0xff]
      %v1532 = vld [vmem:[%s1526 + $0x38] sm:$0xff]
      %v1533 = vld [vmem:[%s1526 + $0x48] sm:$0xff]
      %v1534 = vld [vmem:[%s1526 + $0x50] sm:$0xff]
      %v1535 = vld [vmem:[%s1526 + $0x60] sm:$0xff]
      %v1536 = vld [vmem:[%s1526 + $0x68] sm:$0xff]
      %v1537 = vld [vmem:[%s1526 + $0x78] sm:$0xff]
      %v1538 = vld [vmem:[%s1526 + $0x80] sm:$0xff]
      %v1539 = vld [vmem:[%s1526 + $0x90] sm:$0xff]
      %v1540 = vld [vmem:[%s1526 + $0x98] sm:$0xff]
      %v1541 = vld [vmem:[%s1526 + $0xa8] sm:$0xff]
      %v1542 = vld [vmem:[%s1526 + $0xb0] sm:$0xff]
      %s1543 = scalar_lea.vmem %s1, 24
      %v1544 = vld [vmem:[%s1543] sm:$0xf]
      %v1546 = vsel %vm207, %v1527, 0
      %v1549 = vsel %vm207, %v1528, 0
      %v1552 = vsel %vm207, %v1529, 0
      %v1555 = vsel %vm207, %v1530, 0
      %v1558 = vsel %vm207, %v1531, 0
      %v1561 = vsel %vm207, %v1532, 0
      %v1564 = vsel %vm207, %v1533, 0
      %v1567 = vsel %vm207, %v1534, 0
      %v1570 = vsel %vm207, %v1535, 0
      %v1573 = vsel %vm207, %v1536, 0
      %v1576 = vsel %vm207, %v1537, 0
      %v1579 = vsel %vm207, %v1538, 0
      %v1582 = vsel %vm207, %v1539, 0
      %v1585 = vsel %vm207, %v1540, 0
      %v1588 = vsel %vm207, %v1541, 0
      %v1591 = vsel %vm207, %v1542, 0
      %v1594 = vsel %vm256, %v1544, 0
      %1596 = vmatprep.subr.mxu0 0.0
      %1597 = vmatpush1.msra.mxu0 %v1594
      %1598 = vmatprep.subr.mxu0 0.0
      %1599 = vmatpush1.msra.mxu0 0.0
      %1600 = vmatprep.subr.mxu0 0.0
      %1601 = vmatpush1.msra.mxu0 0.0
      %1602 = vmatprep.subr.mxu0 0.0
      %1603 = vmatpush1.msra.mxu0 0.0
      %1604 = vmatprep.subr.mxu0 0.0
      %1605 = vmatpush1.msra.mxu0 0.0
      %1606 = vmatprep.subr.mxu0 0.0
      %1607 = vmatpush1.msra.mxu0 0.0
      %1608 = vmatprep.subr.mxu0 0.0
      %1609 = vmatpush1.msra.mxu0 0.0
      %1610 = vmatprep.subr.mxu0 0.0
      %1611 = vmatpush1.msra.mxu0 0.0
      %1612 = vmatprep.subr.mxu0 0.0
      %1613 = vmatpush1.msra.mxu0 0.0
      %1614 = vmatprep.subr.mxu0 0.0
      %1615 = vmatpush1.msra.mxu0 0.0
      %1616 = vmatprep.subr.mxu0 0.0
      %1617 = vmatpush1.msra.mxu0 0.0
      %1618 = vmatprep.subr.mxu0 0.0
      %1619 = vmatpush1.msra.mxu0 0.0
      %1620 = vmatprep.subr.mxu0 0.0
      %1621 = vmatpush1.msra.mxu0 0.0
      %1622 = vmatprep.subr.mxu0 0.0
      %1623 = vmatpush1.msra.mxu0 0.0
      %1624 = vmatprep.subr.mxu0 0.0
      %1625 = vmatpush1.msra.mxu0 0.0
      %1626 = vmatprep.subr.mxu0 0.0
      %1627 = vmatpush1.msra.mxu0 0.0
      %1628 = vmatprep.subr.mxu0 0.0
      %1629 = vmatpush1.msra.mxu0 0.0
      %1630 = vmatprep.subr.mxu0 0.0
      %1631 = vmatpush1.msra.mxu0 0.0
      %1632 = vmatprep.subr.mxu0 0.0
      %1633 = vmatpush1.msra.mxu0 0.0
      %1634 = vmatprep.subr.mxu0 0.0
      %1635 = vmatpush1.msra.mxu0 0.0
      %1636 = vmatprep.subr.mxu0 0.0
      %1637 = vmatpush1.msra.mxu0 0.0
      %1638 = vmatprep.subr.mxu0 0.0
      %1639 = vmatpush1.msra.mxu0 0.0
      %1640 = vmatprep.subr.mxu0 0.0
      %1641 = vmatpush1.msra.mxu0 0.0
      %1642 = vmatprep.subr.mxu0 0.0
      %1643 = vmatpush1.msra.mxu0 0.0
      %1644 = vmatprep.subr.mxu0 0.0
      %1645 = vmatpush1.msra.mxu0 0.0
      %1646 = vmatprep.subr.mxu0 0.0
      %1647 = vmatpush1.msra.mxu0 0.0
      %1648 = vmatprep.subr.mxu0 0.0
      %1649 = vmatpush1.msra.mxu0 0.0
      %1650 = vmatprep.subr.mxu0 0.0
      %1651 = vmatpush1.msra.mxu0 0.0
      %1652 = vmatprep.subr.mxu0 0.0
      %1653 = vmatpush1.msra.mxu0 0.0
      %1654 = vmatprep.subr.mxu0 0.0
      %1655 = vmatpush1.msra.mxu0 0.0
      %1656 = vmatprep.subr.mxu0 0.0
      %1657 = vmatpush1.msra.mxu0 0.0
      %1658 = vmatprep.subr.mxu0 0.0
      %1659 = vmatpush1.msra.mxu0 0.0
      %1660 = vmatprep.mubr.f32.mxu0 0.0
      %1661 = vmatmul.mubr.f32.gmra.mrb[0].mxu0 %v1546
      %v1662 = vpop.f32.mrb[0].mxu0
      %v1663 = vadd.f32 0.0, %v1662
      %v1664 = vpop.f32.mrb[0].mxu0
      %1665 = vmatprep.mubr.f32.mxu0 0.0
      %1666 = vmatmul.mubr.f32.gmra.mrb[0].mxu0 %v1549
      %v1667 = vpop.f32.mrb[0].mxu0
      %v1668 = vadd.f32 0.0, %v1667
      %v1669 = vpop.f32.mrb[0].mxu0
      %1670 = vmatprep.mubr.f32.mxu0 0.0
      %1671 = vmatmul.mubr.f32.gmra.mrb[0].mxu0 %v1552
      %v1672 = vpop.f32.mrb[0].mxu0
      %v1673 = vadd.f32 0.0, %v1672
      %v1674 = vpop.f32.mrb[0].mxu0
      %1675 = vmatprep.mubr.f32.mxu0 0.0
      %1676 = vmatmul.mubr.f32.gmra.mrb[0].mxu0 %v1555
      %v1677 = vpop.f32.mrb[0].mxu0
      %v1678 = vadd.f32 0.0, %v1677
      %v1679 = vpop.f32.mrb[0].mxu0
      %1680 = vmatprep.mubr.f32.mxu0 0.0
      %1681 = vmatmul.mubr.f32.gmra.mrb[0].mxu0 %v1558
      %v1682 = vpop.f32.mrb[0].mxu0
      %v1683 = vadd.f32 0.0, %v1682
      %v1684 = vpop.f32.mrb[0].mxu0
      %1685 = vmatprep.mubr.f32.mxu0 0.0
      %1686 = vmatmul.mubr.f32.gmra.mrb[0].mxu0 %v1561
      %v1687 = vpop.f32.mrb[0].mxu0
      %v1688 = vadd.f32 0.0, %v1687
      %v1689 = vpop.f32.mrb[0].mxu0
      %1690 = vmatprep.mubr.f32.mxu0 0.0
      %1691 = vmatmul.mubr.f32.gmra.mrb[0].mxu0 %v1564
      %v1692 = vpop.f32.mrb[0].mxu0
      %v1693 = vadd.f32 0.0, %v1692
      %v1694 = vpop.f32.mrb[0].mxu0
      %1695 = vmatprep.mubr.f32.mxu0 0.0
      %1696 = vmatmul.mubr.f32.gmra.mrb[0].mxu0 %v1567
      %v1697 = vpop.f32.mrb[0].mxu0
      %v1698 = vadd.f32 0.0, %v1697
      %v1699 = vpop.f32.mrb[0].mxu0
      %1700 = vmatprep.mubr.f32.mxu0 0.0
      %1701 = vmatmul.mubr.f32.gmra.mrb[0].mxu0 %v1570
      %v1702 = vpop.f32.mrb[0].mxu0
      %v1703 = vadd.f32 0.0, %v1702
      %v1704 = vpop.f32.mrb[0].mxu0
      %1705 = vmatprep.mubr.f32.mxu0 0.0
      %1706 = vmatmul.mubr.f32.gmra.mrb[0].mxu0 %v1573
      %v1707 = vpop.f32.mrb[0].mxu0
      %v1708 = vadd.f32 0.0, %v1707
      %v1709 = vpop.f32.mrb[0].mxu0
      %1710 = vmatprep.mubr.f32.mxu0 0.0
      %1711 = vmatmul.mubr.f32.gmra.mrb[0].mxu0 %v1576
      %v1712 = vpop.f32.mrb[0].mxu0
      %v1713 = vadd.f32 0.0, %v1712
      %v1714 = vpop.f32.mrb[0].mxu0
      %1715 = vmatprep.mubr.f32.mxu0 0.0
      %1716 = vmatmul.mubr.f32.gmra.mrb[0].mxu0 %v1579
      %v1717 = vpop.f32.mrb[0].mxu0
      %v1718 = vadd.f32 0.0, %v1717
      %v1719 = vpop.f32.mrb[0].mxu0
      %1720 = vmatprep.mubr.f32.mxu0 0.0
      %1721 = vmatmul.mubr.f32.gmra.mrb[0].mxu0 %v1582
      %v1722 = vpop.f32.mrb[0].mxu0
      %v1723 = vadd.f32 0.0, %v1722
      %v1724 = vpop.f32.mrb[0].mxu0
      %1725 = vmatprep.mubr.f32.mxu0 0.0
      %1726 = vmatmul.mubr.f32.gmra.mrb[0].mxu0 %v1585
      %v1727 = vpop.f32.mrb[0].mxu0
      %v1728 = vadd.f32 0.0, %v1727
      %v1729 = vpop.f32.mrb[0].mxu0
      %1730 = vmatprep.mubr.f32.mxu0 0.0
      %1731 = vmatmul.mubr.f32.gmra.mrb[0].mxu0 %v1588
      %v1732 = vpop.f32.mrb[0].mxu0
      %v1733 = vadd.f32 0.0, %v1732
      %v1734 = vpop.f32.mrb[0].mxu0
      %1735 = vmatprep.mubr.f32.mxu0 0.0
      %1736 = vmatmul.mubr.f32.gmra.mrb[0].mxu0 %v1591
      %v1737 = vpop.f32.mrb[0].mxu0
      %v1738 = vadd.f32 0.0, %v1737
      %v1739 = vpop.f32.mrb[0].mxu0
      %1740 = vdwg.mxu0
      %v1741 = vadd.f32 %v1508, %v1663
      %v1742 = vadd.f32 %v1509, %v1668
      %v1743 = vadd.f32 %v1510, %v1673
      %v1744 = vadd.f32 %v1511, %v1678
      %v1745 = vadd.f32 %v1512, %v1683
      %v1746 = vadd.f32 %v1513, %v1688
      %v1747 = vadd.f32 %v1514, %v1693
      %v1748 = vadd.f32 %v1515, %v1698
      %v1749 = vadd.f32 %v1516, %v1703
      %v1750 = vadd.f32 %v1517, %v1708
      %v1751 = vadd.f32 %v1518, %v1713
      %v1752 = vadd.f32 %v1519, %v1718
      %v1753 = vadd.f32 %v1520, %v1723
      %v1754 = vadd.f32 %v1521, %v1728
      %v1755 = vadd.f32 %v1522, %v1733
      %v1756 = vadd.f32 %v1523, %v1738
      %v1757 = vld [vmem:[%s1526 + $0x2] sm:$0xff]
      %v1758 = vld [vmem:[%s1526 + $0xa] sm:$0xff]
      %v1759 = vld [vmem:[%s1526 + $0x1a] sm:$0xff]
      %v1760 = vld [vmem:[%s1526 + $0x22] sm:$0xff]
      %v1761 = vld [vmem:[%s1526 + $0x32] sm:$0xff]
      %v1762 = vld [vmem:[%s1526 + $0x3a] sm:$0xff]
      %v1763 = vld [vmem:[%s1526 + $0x4a] sm:$0xff]
      %v1764 = vld [vmem:[%s1526 + $0x52] sm:$0xff]
      %v1765 = vld [vmem:[%s1526 + $0x62] sm:$0xff]
      %v1766 = vld [vmem:[%s1526 + $0x6a] sm:$0xff]
      %v1767 = vld [vmem:[%s1526 + $0x7a] sm:$0xff]
      %v1768 = vld [vmem:[%s1526 + $0x82] sm:$0xff]
      %v1769 = vld [vmem:[%s1526 + $0x92] sm:$0xff]
      %v1770 = vld [vmem:[%s1526 + $0x9a] sm:$0xff]
      %v1771 = vld [vmem:[%s1526 + $0xaa] sm:$0xff]
      %v1772 = vld [vmem:[%s1526 + $0xb2] sm:$0xff]
      %s1773 = scalar_lea.vmem %s1, 28
      %v1774 = vld [vmem:[%s1773] sm:$0xf]
      %v1776 = vsel %vm207, %v1757, 0
      %v1779 = vsel %vm207, %v1758, 0
      %v1782 = vsel %vm207, %v1759, 0
      %v1785 = vsel %vm207, %v1760, 0
      %v1788 = vsel %vm207, %v1761, 0
      %v1791 = vsel %vm207, %v1762, 0
      %v1794 = vsel %vm207, %v1763, 0
      %v1797 = vsel %vm207, %v1764, 0
      %v1800 = vsel %vm207, %v1765, 0
      %v1803 = vsel %vm207, %v1766, 0
      %v1806 = vsel %vm207, %v1767, 0
      %v1809 = vsel %vm207, %v1768, 0
      %v1812 = vsel %vm207, %v1769, 0
      %v1815 = vsel %vm207, %v1770, 0
      %v1818 = vsel %vm207, %v1771, 0
      %v1821 = vsel %vm207, %v1772, 0
      %v1824 = vsel %vm256, %v1774, 0
      %1826 = vmatprep.subr.mxu0 0.0
      %1827 = vmatpush1.msra.mxu0 %v1824
      %1828 = vmatprep.subr.mxu0 0.0
      %1829 = vmatpush1.msra.mxu0 0.0
      %1830 = vmatprep.subr.mxu0 0.0
      %1831 = vmatpush1.msra.mxu0 0.0
      %1832 = vmatprep.subr.mxu0 0.0
      %1833 = vmatpush1.msra.mxu0 0.0
      %1834 = vmatprep.subr.mxu0 0.0
      %1835 = vmatpush1.msra.mxu0 0.0
      %1836 = vmatprep.subr.mxu0 0.0
      %1837 = vmatpush1.msra.mxu0 0.0
      %1838 = vmatprep.subr.mxu0 0.0
      %1839 = vmatpush1.msra.mxu0 0.0
      %1840 = vmatprep.subr.mxu0 0.0
      %1841 = vmatpush1.msra.mxu0 0.0
      %1842 = vmatprep.subr.mxu0 0.0
      %1843 = vmatpush1.msra.mxu0 0.0
      %1844 = vmatprep.subr.mxu0 0.0
      %1845 = vmatpush1.msra.mxu0 0.0
      %1846 = vmatprep.subr.mxu0 0.0
      %1847 = vmatpush1.msra.mxu0 0.0
      %1848 = vmatprep.subr.mxu0 0.0
      %1849 = vmatpush1.msra.mxu0 0.0
      %1850 = vmatprep.subr.mxu0 0.0
      %1851 = vmatpush1.msra.mxu0 0.0
      %1852 = vmatprep.subr.mxu0 0.0
      %1853 = vmatpush1.msra.mxu0 0.0
      %1854 = vmatprep.subr.mxu0 0.0
      %1855 = vmatpush1.msra.mxu0 0.0
      %1856 = vmatprep.subr.mxu0 0.0
      %1857 = vmatpush1.msra.mxu0 0.0
      %1858 = vmatprep.subr.mxu0 0.0
      %1859 = vmatpush1.msra.mxu0 0.0
      %1860 = vmatprep.subr.mxu0 0.0
      %1861 = vmatpush1.msra.mxu0 0.0
      %1862 = vmatprep.subr.mxu0 0.0
      %1863 = vmatpush1.msra.mxu0 0.0
      %1864 = vmatprep.subr.mxu0 0.0
      %1865 = vmatpush1.msra.mxu0 0.0
      %1866 = vmatprep.subr.mxu0 0.0
      %1867 = vmatpush1.msra.mxu0 0.0
      %1868 = vmatprep.subr.mxu0 0.0
      %1869 = vmatpush1.msra.mxu0 0.0
      %1870 = vmatprep.subr.mxu0 0.0
      %1871 = vmatpush1.msra.mxu0 0.0
      %1872 = vmatprep.subr.mxu0 0.0
      %1873 = vmatpush1.msra.mxu0 0.0
      %1874 = vmatprep.subr.mxu0 0.0
      %1875 = vmatpush1.msra.mxu0 0.0
      %1876 = vmatprep.subr.mxu0 0.0
      %1877 = vmatpush1.msra.mxu0 0.0
      %1878 = vmatprep.subr.mxu0 0.0
      %1879 = vmatpush1.msra.mxu0 0.0
      %1880 = vmatprep.subr.mxu0 0.0
      %1881 = vmatpush1.msra.mxu0 0.0
      %1882 = vmatprep.subr.mxu0 0.0
      %1883 = vmatpush1.msra.mxu0 0.0
      %1884 = vmatprep.subr.mxu0 0.0
      %1885 = vmatpush1.msra.mxu0 0.0
      %1886 = vmatprep.subr.mxu0 0.0
      %1887 = vmatpush1.msra.mxu0 0.0
      %1888 = vmatprep.subr.mxu0 0.0
      %1889 = vmatpush1.msra.mxu0 0.0
      %1890 = vmatprep.mubr.f32.mxu0 0.0
      %1891 = vmatmul.mubr.f32.gmra.mrb[0].mxu0 %v1776
      %v1892 = vpop.f32.mrb[0].mxu0
      %v1893 = vadd.f32 0.0, %v1892
      %v1894 = vpop.f32.mrb[0].mxu0
      %1895 = vmatprep.mubr.f32.mxu0 0.0
      %1896 = vmatmul.mubr.f32.gmra.mrb[0].mxu0 %v1779
      %v1897 = vpop.f32.mrb[0].mxu0
      %v1898 = vadd.f32 0.0, %v1897
      %v1899 = vpop.f32.mrb[0].mxu0
      %1900 = vmatprep.mubr.f32.mxu0 0.0
      %1901 = vmatmul.mubr.f32.gmra.mrb[0].mxu0 %v1782
      %v1902 = vpop.f32.mrb[0].mxu0
      %v1903 = vadd.f32 0.0, %v1902
      %v1904 = vpop.f32.mrb[0].mxu0
      %1905 = vmatprep.mubr.f32.mxu0 0.0
      %1906 = vmatmul.mubr.f32.gmra.mrb[0].mxu0 %v1785
      %v1907 = vpop.f32.mrb[0].mxu0
      %v1908 = vadd.f32 0.0, %v1907
      %v1909 = vpop.f32.mrb[0].mxu0
      %1910 = vmatprep.mubr.f32.mxu0 0.0
      %1911 = vmatmul.mubr.f32.gmra.mrb[0].mxu0 %v1788
      %v1912 = vpop.f32.mrb[0].mxu0
      %v1913 = vadd.f32 0.0, %v1912
      %v1914 = vpop.f32.mrb[0].mxu0
      %1915 = vmatprep.mubr.f32.mxu0 0.0
      %1916 = vmatmul.mubr.f32.gmra.mrb[0].mxu0 %v1791
      %v1917 = vpop.f32.mrb[0].mxu0
      %v1918 = vadd.f32 0.0, %v1917
      %v1919 = vpop.f32.mrb[0].mxu0
      %1920 = vmatprep.mubr.f32.mxu0 0.0
      %1921 = vmatmul.mubr.f32.gmra.mrb[0].mxu0 %v1794
      %v1922 = vpop.f32.mrb[0].mxu0
      %v1923 = vadd.f32 0.0, %v1922
      %v1924 = vpop.f32.mrb[0].mxu0
      %1925 = vmatprep.mubr.f32.mxu0 0.0
      %1926 = vmatmul.mubr.f32.gmra.mrb[0].mxu0 %v1797
      %v1927 = vpop.f32.mrb[0].mxu0
      %v1928 = vadd.f32 0.0, %v1927
      %v1929 = vpop.f32.mrb[0].mxu0
      %1930 = vmatprep.mubr.f32.mxu0 0.0
      %1931 = vmatmul.mubr.f32.gmra.mrb[0].mxu0 %v1800
      %v1932 = vpop.f32.mrb[0].mxu0
      %v1933 = vadd.f32 0.0, %v1932
      %v1934 = vpop.f32.mrb[0].mxu0
      %1935 = vmatprep.mubr.f32.mxu0 0.0
      %1936 = vmatmul.mubr.f32.gmra.mrb[0].mxu0 %v1803
      %v1937 = vpop.f32.mrb[0].mxu0
      %v1938 = vadd.f32 0.0, %v1937
      %v1939 = vpop.f32.mrb[0].mxu0
      %1940 = vmatprep.mubr.f32.mxu0 0.0
      %1941 = vmatmul.mubr.f32.gmra.mrb[0].mxu0 %v1806
      %v1942 = vpop.f32.mrb[0].mxu0
      %v1943 = vadd.f32 0.0, %v1942
      %v1944 = vpop.f32.mrb[0].mxu0
      %1945 = vmatprep.mubr.f32.mxu0 0.0
      %1946 = vmatmul.mubr.f32.gmra.mrb[0].mxu0 %v1809
      %v1947 = vpop.f32.mrb[0].mxu0
      %v1948 = vadd.f32 0.0, %v1947
      %v1949 = vpop.f32.mrb[0].mxu0
      %1950 = vmatprep.mubr.f32.mxu0 0.0
      %1951 = vmatmul.mubr.f32.gmra.mrb[0].mxu0 %v1812
      %v1952 = vpop.f32.mrb[0].mxu0
      %v1953 = vadd.f32 0.0, %v1952
      %v1954 = vpop.f32.mrb[0].mxu0
      %1955 = vmatprep.mubr.f32.mxu0 0.0
      %1956 = vmatmul.mubr.f32.gmra.mrb[0].mxu0 %v1815
      %v1957 = vpop.f32.mrb[0].mxu0
      %v1958 = vadd.f32 0.0, %v1957
      %v1959 = vpop.f32.mrb[0].mxu0
      %1960 = vmatprep.mubr.f32.mxu0 0.0
      %1961 = vmatmul.mubr.f32.gmra.mrb[0].mxu0 %v1818
      %v1962 = vpop.f32.mrb[0].mxu0
      %v1963 = vadd.f32 0.0, %v1962
      %v1964 = vpop.f32.mrb[0].mxu0
      %1965 = vmatprep.mubr.f32.mxu0 0.0
      %1966 = vmatmul.mubr.f32.gmra.mrb[0].mxu0 %v1821
      %v1967 = vpop.f32.mrb[0].mxu0
      %v1968 = vadd.f32 0.0, %v1967
      %v1969 = vpop.f32.mrb[0].mxu0
      %1970 = vdwg.mxu0
      %v1971 = vadd.f32 %v1741, %v1893
      %v1972 = vadd.f32 %v1742, %v1898
      %v1973 = vadd.f32 %v1743, %v1903
      %v1974 = vadd.f32 %v1744, %v1908
      %v1975 = vadd.f32 %v1745, %v1913
      %v1976 = vadd.f32 %v1746, %v1918
      %v1977 = vadd.f32 %v1747, %v1923
      %v1978 = vadd.f32 %v1748, %v1928
      %v1979 = vadd.f32 %v1749, %v1933
      %v1980 = vadd.f32 %v1750, %v1938
      %v1981 = vadd.f32 %v1751, %v1943
      %v1982 = vadd.f32 %v1752, %v1948
      %v1983 = vadd.f32 %v1753, %v1953
      %v1984 = vadd.f32 %v1754, %v1958
      %v1985 = vadd.f32 %v1755, %v1963
      %v1986 = vadd.f32 %v1756, %v1968
      %v1987 = vld [vmem:[%s1526 + $0x4] sm:$0xff]
      %v1988 = vld [vmem:[%s1526 + $0xc] sm:$0xff]
      %v1989 = vld [vmem:[%s1526 + $0x1c] sm:$0xff]
      %v1990 = vld [vmem:[%s1526 + $0x24] sm:$0xff]
      %v1991 = vld [vmem:[%s1526 + $0x34] sm:$0xff]
      %v1992 = vld [vmem:[%s1526 + $0x3c] sm:$0xff]
      %v1993 = vld [vmem:[%s1526 + $0x4c] sm:$0xff]
      %v1994 = vld [vmem:[%s1526 + $0x54] sm:$0xff]
      %v1995 = vld [vmem:[%s1526 + $0x64] sm:$0xff]
      %v1996 = vld [vmem:[%s1526 + $0x6c] sm:$0xff]
      %v1997 = vld [vmem:[%s1526 + $0x7c] sm:$0xff]
      %v1998 = vld [vmem:[%s1526 + $0x84] sm:$0xff]
      %v1999 = vld [vmem:[%s1526 + $0x94] sm:$0xff]
      %v2000 = vld [vmem:[%s1526 + $0x9c] sm:$0xff]
      %v2001 = vld [vmem:[%s1526 + $0xac] sm:$0xff]
      %v2002 = vld [vmem:[%s1526 + $0xb4] sm:$0xff]
      %s2003 = scalar_lea.vmem %s1, 32
      %v2004 = vld [vmem:[%s2003] sm:$0xf]
      %v2006 = vsel %vm207, %v1987, 0
      %v2009 = vsel %vm207, %v1988, 0
      %v2012 = vsel %vm207, %v1989, 0
      %v2015 = vsel %vm207, %v1990, 0
      %v2018 = vsel %vm207, %v1991, 0
      %v2021 = vsel %vm207, %v1992, 0
      %v2024 = vsel %vm207, %v1993, 0
      %v2027 = vsel %vm207, %v1994, 0
      %v2030 = vsel %vm207, %v1995, 0
      %v2033 = vsel %vm207, %v1996, 0
      %v2036 = vsel %vm207, %v1997, 0
      %v2039 = vsel %vm207, %v1998, 0
      %v2042 = vsel %vm207, %v1999, 0
      %v2045 = vsel %vm207, %v2000, 0
      %v2048 = vsel %vm207, %v2001, 0
      %v2051 = vsel %vm207, %v2002, 0
      %v2054 = vsel %vm256, %v2004, 0
      %2056 = vmatprep.subr.mxu0 0.0
      %2057 = vmatpush1.msra.mxu0 %v2054
      %2058 = vmatprep.subr.mxu0 0.0
      %2059 = vmatpush1.msra.mxu0 0.0
      %2060 = vmatprep.subr.mxu0 0.0
      %2061 = vmatpush1.msra.mxu0 0.0
      %2062 = vmatprep.subr.mxu0 0.0
      %2063 = vmatpush1.msra.mxu0 0.0
      %2064 = vmatprep.subr.mxu0 0.0
      %2065 = vmatpush1.msra.mxu0 0.0
      %2066 = vmatprep.subr.mxu0 0.0
      %2067 = vmatpush1.msra.mxu0 0.0
      %2068 = vmatprep.subr.mxu0 0.0
      %2069 = vmatpush1.msra.mxu0 0.0
      %2070 = vmatprep.subr.mxu0 0.0
      %2071 = vmatpush1.msra.mxu0 0.0
      %2072 = vmatprep.subr.mxu0 0.0
      %2073 = vmatpush1.msra.mxu0 0.0
      %2074 = vmatprep.subr.mxu0 0.0
      %2075 = vmatpush1.msra.mxu0 0.0
      %2076 = vmatprep.subr.mxu0 0.0
      %2077 = vmatpush1.msra.mxu0 0.0
      %2078 = vmatprep.subr.mxu0 0.0
      %2079 = vmatpush1.msra.mxu0 0.0
      %2080 = vmatprep.subr.mxu0 0.0
      %2081 = vmatpush1.msra.mxu0 0.0
      %2082 = vmatprep.subr.mxu0 0.0
      %2083 = vmatpush1.msra.mxu0 0.0
      %2084 = vmatprep.subr.mxu0 0.0
      %2085 = vmatpush1.msra.mxu0 0.0
      %2086 = vmatprep.subr.mxu0 0.0
      %2087 = vmatpush1.msra.mxu0 0.0
      %2088 = vmatprep.subr.mxu0 0.0
      %2089 = vmatpush1.msra.mxu0 0.0
      %2090 = vmatprep.subr.mxu0 0.0
      %2091 = vmatpush1.msra.mxu0 0.0
      %2092 = vmatprep.subr.mxu0 0.0
      %2093 = vmatpush1.msra.mxu0 0.0
      %2094 = vmatprep.subr.mxu0 0.0
      %2095 = vmatpush1.msra.mxu0 0.0
      %2096 = vmatprep.subr.mxu0 0.0
      %2097 = vmatpush1.msra.mxu0 0.0
      %2098 = vmatprep.subr.mxu0 0.0
      %2099 = vmatpush1.msra.mxu0 0.0
      %2100 = vmatprep.subr.mxu0 0.0
      %2101 = vmatpush1.msra.mxu0 0.0
      %2102 = vmatprep.subr.mxu0 0.0
      %2103 = vmatpush1.msra.mxu0 0.0
      %2104 = vmatprep.subr.mxu0 0.0
      %2105 = vmatpush1.msra.mxu0 0.0
      %2106 = vmatprep.subr.mxu0 0.0
      %2107 = vmatpush1.msra.mxu0 0.0
      %2108 = vmatprep.subr.mxu0 0.0
      %2109 = vmatpush1.msra.mxu0 0.0
      %2110 = vmatprep.subr.mxu0 0.0
      %2111 = vmatpush1.msra.mxu0 0.0
      %2112 = vmatprep.subr.mxu0 0.0
      %2113 = vmatpush1.msra.mxu0 0.0
      %2114 = vmatprep.subr.mxu0 0.0
      %2115 = vmatpush1.msra.mxu0 0.0
      %2116 = vmatprep.subr.mxu0 0.0
      %2117 = vmatpush1.msra.mxu0 0.0
      %2118 = vmatprep.subr.mxu0 0.0
      %2119 = vmatpush1.msra.mxu0 0.0
      %2120 = vmatprep.mubr.f32.mxu0 0.0
      %2121 = vmatmul.mubr.f32.gmra.mrb[0].mxu0 %v2006
      %v2122 = vpop.f32.mrb[0].mxu0
      %v2123 = vadd.f32 0.0, %v2122
      %v2124 = vpop.f32.mrb[0].mxu0
      %2125 = vmatprep.mubr.f32.mxu0 0.0
      %2126 = vmatmul.mubr.f32.gmra.mrb[0].mxu0 %v2009
      %v2127 = vpop.f32.mrb[0].mxu0
      %v2128 = vadd.f32 0.0, %v2127
      %v2129 = vpop.f32.mrb[0].mxu0
      %2130 = vmatprep.mubr.f32.mxu0 0.0
      %2131 = vmatmul.mubr.f32.gmra.mrb[0].mxu0 %v2012
      %v2132 = vpop.f32.mrb[0].mxu0
      %v2133 = vadd.f32 0.0, %v2132
      %v2134 = vpop.f32.mrb[0].mxu0
      %2135 = vmatprep.mubr.f32.mxu0 0.0
      %2136 = vmatmul.mubr.f32.gmra.mrb[0].mxu0 %v2015
      %v2137 = vpop.f32.mrb[0].mxu0
      %v2138 = vadd.f32 0.0, %v2137
      %v2139 = vpop.f32.mrb[0].mxu0
      %2140 = vmatprep.mubr.f32.mxu0 0.0
      %2141 = vmatmul.mubr.f32.gmra.mrb[0].mxu0 %v2018
      %v2142 = vpop.f32.mrb[0].mxu0
      %v2143 = vadd.f32 0.0, %v2142
      %v2144 = vpop.f32.mrb[0].mxu0
      %2145 = vmatprep.mubr.f32.mxu0 0.0
      %2146 = vmatmul.mubr.f32.gmra.mrb[0].mxu0 %v2021
      %v2147 = vpop.f32.mrb[0].mxu0
      %v2148 = vadd.f32 0.0, %v2147
      %v2149 = vpop.f32.mrb[0].mxu0
      %2150 = vmatprep.mubr.f32.mxu0 0.0
      %2151 = vmatmul.mubr.f32.gmra.mrb[0].mxu0 %v2024
      %v2152 = vpop.f32.mrb[0].mxu0
      %v2153 = vadd.f32 0.0, %v2152
      %v2154 = vpop.f32.mrb[0].mxu0
      %2155 = vmatprep.mubr.f32.mxu0 0.0
      %2156 = vmatmul.mubr.f32.gmra.mrb[0].mxu0 %v2027
      %v2157 = vpop.f32.mrb[0].mxu0
      %v2158 = vadd.f32 0.0, %v2157
      %v2159 = vpop.f32.mrb[0].mxu0
      %2160 = vmatprep.mubr.f32.mxu0 0.0
      %2161 = vmatmul.mubr.f32.gmra.mrb[0].mxu0 %v2030
      %v2162 = vpop.f32.mrb[0].mxu0
      %v2163 = vadd.f32 0.0, %v2162
      %v2164 = vpop.f32.mrb[0].mxu0
      %2165 = vmatprep.mubr.f32.mxu0 0.0
      %2166 = vmatmul.mubr.f32.gmra.mrb[0].mxu0 %v2033
      %v2167 = vpop.f32.mrb[0].mxu0
      %v2168 = vadd.f32 0.0, %v2167
      %v2169 = vpop.f32.mrb[0].mxu0
      %2170 = vmatprep.mubr.f32.mxu0 0.0
      %2171 = vmatmul.mubr.f32.gmra.mrb[0].mxu0 %v2036
      %v2172 = vpop.f32.mrb[0].mxu0
      %v2173 = vadd.f32 0.0, %v2172
      %v2174 = vpop.f32.mrb[0].mxu0
      %2175 = vmatprep.mubr.f32.mxu0 0.0
      %2176 = vmatmul.mubr.f32.gmra.mrb[0].mxu0 %v2039
      %v2177 = vpop.f32.mrb[0].mxu0
      %v2178 = vadd.f32 0.0, %v2177
      %v2179 = vpop.f32.mrb[0].mxu0
      %2180 = vmatprep.mubr.f32.mxu0 0.0
      %2181 = vmatmul.mubr.f32.gmra.mrb[0].mxu0 %v2042
      %v2182 = vpop.f32.mrb[0].mxu0
      %v2183 = vadd.f32 0.0, %v2182
      %v2184 = vpop.f32.mrb[0].mxu0
      %2185 = vmatprep.mubr.f32.mxu0 0.0
      %2186 = vmatmul.mubr.f32.gmra.mrb[0].mxu0 %v2045
      %v2187 = vpop.f32.mrb[0].mxu0
      %v2188 = vadd.f32 0.0, %v2187
      %v2189 = vpop.f32.mrb[0].mxu0
      %2190 = vmatprep.mubr.f32.mxu0 0.0
      %2191 = vmatmul.mubr.f32.gmra.mrb[0].mxu0 %v2048
      %v2192 = vpop.f32.mrb[0].mxu0
      %v2193 = vadd.f32 0.0, %v2192
      %v2194 = vpop.f32.mrb[0].mxu0
      %2195 = vmatprep.mubr.f32.mxu0 0.0
      %2196 = vmatmul.mubr.f32.gmra.mrb[0].mxu0 %v2051
      %v2197 = vpop.f32.mrb[0].mxu0
      %v2198 = vadd.f32 0.0, %v2197
      %v2199 = vpop.f32.mrb[0].mxu0
      %2200 = vdwg.mxu0
      %v2201 = vadd.f32 %v1971, %v2123
      %v2202 = vadd.f32 %v1972, %v2128
      %v2203 = vadd.f32 %v1973, %v2133
      %v2204 = vadd.f32 %v1974, %v2138
      %v2205 = vadd.f32 %v1975, %v2143
      %v2206 = vadd.f32 %v1976, %v2148
      %v2207 = vadd.f32 %v1977, %v2153
      %v2208 = vadd.f32 %v1978, %v2158
      %v2209 = vadd.f32 %v1979, %v2163
      %v2210 = vadd.f32 %v1980, %v2168
      %v2211 = vadd.f32 %v1981, %v2173
      %v2212 = vadd.f32 %v1982, %v2178
      %v2213 = vadd.f32 %v1983, %v2183
      %v2214 = vadd.f32 %v1984, %v2188
      %v2215 = vadd.f32 %v1985, %v2193
      %v2216 = vadd.f32 %v1986, %v2198
      %vm2217 = vcmask 64512
      %2218 = vst.msk [vmem:[%s167] sm:$0xff] %vm2217, %v2201
      %2219 = vst.msk [vmem:[%s167 + $0x8] sm:$0xff] %vm2217, %v2202
      %2220 = vst.msk [vmem:[%s167 + $0x10] sm:$0xff] %vm2217, %v2203
      %2221 = vst.msk [vmem:[%s167 + $0x18] sm:$0xff] %vm2217, %v2204
      %2222 = vst.msk [vmem:[%s167 + $0x20] sm:$0xff] %vm2217, %v2205
      %2223 = vst.msk [vmem:[%s167 + $0x28] sm:$0xff] %vm2217, %v2206
      %2224 = vst.msk [vmem:[%s167 + $0x30] sm:$0xff] %vm2217, %v2207
      %2225 = vst.msk [vmem:[%s167 + $0x38] sm:$0xff] %vm2217, %v2208
      %2226 = vst.msk [vmem:[%s167 + $0x40] sm:$0xff] %vm2217, %v2209
      %2227 = vst.msk [vmem:[%s167 + $0x48] sm:$0xff] %vm2217, %v2210
      %2228 = vst.msk [vmem:[%s167 + $0x50] sm:$0xff] %vm2217, %v2211
      %2229 = vst.msk [vmem:[%s167 + $0x58] sm:$0xff] %vm2217, %v2212
      %2230 = vst.msk [vmem:[%s167 + $0x60] sm:$0xff] %vm2217, %v2213
      %2231 = vst.msk [vmem:[%s167 + $0x68] sm:$0xff] %vm2217, %v2214
      %2232 = vst.msk [vmem:[%s167 + $0x70] sm:$0xff] %vm2217, %v2215
      %2233 = vst.msk [vmem:[%s167 + $0x78] sm:$0xff] %vm2217, %v2216
      %s2234 = smul.u32 8, %s18
      %p2235 = scmp.lt.s32.totalorder %s17, 1
      %s2236 = scalar_select %p2235, %s17, 1
      %p2237 = scmp.lt.s32.totalorder %s2234, 15
      %s2238 = scalar_select %p2237, %s2234, 15
      %s2239 = smul.addr %s2238, 2
      %s2240 = smul.addr %s2236, 32
      %s2241 = sadd.s32 %s2239, %s2240
      %s2242 = smul.addr %s2241, 8
      %s2243 = scalar_lea.vmem %s2, %s2242
      // Predicated region
      $region29: #{cdilated.1} parent=27 // pred_check
        %p2244 = pneg %p92
      $region30: #{cdilated.1} parent=27 // pred_check_branch
        %2246 = sbr.rel (%p2244) target = $region32
      $region31: #{cdilated.1} parent=27 // pred_region
        %s2247 = smul.u32 8, %s18
      $region32: #{cdilated.1} parent=27 // pred_fallthru
        _
    $region28: #{cdilated.1} parent=5 // pred_fallthru
      _
    %p2248 = scmp.le.s32.totalorder 2, %s8
    // Predicated region
    $region33: #{cdilated.1} parent=5 // pred_check
      %p2249 = pneg %p2248
    $region34: #{cdilated.1} parent=5 // pred_check_branch
      %2251 = sbr.rel (%p2249) target = $region36
    $region35: #{cdilated.1} parent=5 // pred_region
      %s2252 = ssub.s32 %s8, 2
      // Predicated region
      $region37: #{cdilated.1} parent=35 // pred_check
        %p2253 = pneg %p98
      $region38: #{cdilated.1} parent=35 // pred_check_branch
        %2255 = sbr.rel (%p2253) target = $region40
      $region39: #{cdilated.1} parent=35 // pred_region
        %s2256 = smul.u32 8, %s20
        %p2257 = scmp.lt.s32.totalorder %s19, 1
        %s2258 = scalar_select %p2257, %s19, 1
        %p2259 = scmp.lt.s32.totalorder %s2256, 15
        %s2260 = scalar_select %p2259, %s2256, 15
        %s2261 = smul.addr %s2260, 2
        %s2262 = smul.addr %s2258, 32
        %s2263 = sadd.s32 %s2261, %s2262
        %s2264 = smul.addr %s2263, 8
        %s2265 = scalar_lea.vmem %s2, %s2264
      $region40: #{cdilated.1} parent=35 // pred_fallthru
        _
    $region36: #{cdilated.1} parent=5 // pred_fallthru
      _
  $region6: #{cdilated.1} parent=0 // loop_footer
    %s12 = sadd.s32 1, %s8
  $region7: #{cdilated.1} parent=0 // loop_footer_branch
    %7 = sbr.rel target = $region3
  $region8: #{cdilated.1} parent=0 // loop_exit
    _

</llo_original>
